<compile_context>
chip_gen: v7x
topology: tpu7x:2x2x1
jax: 0.10.0
libtpu: 0.0.40
codegen_flags: <defaults>
</compile_context>

<pallas_src>
import functools

import jax
import jax.numpy as jnp
from jax.experimental import pallas as pl
from jax.experimental.pallas import tpu as pltpu

HID_P = 128   # hidden width 64 padded to the 128-lane axis
F1_P = 128    # fc1 width 32 padded
C_P = 128     # num classes 10 padded


# ------------------------------ fused Pallas kernel ------------------------------

def _fused_gcn_kernel(nout,
                      a_ref, x_ref,
                      w1_ref, b1_ref, w2_ref, b2_ref, w3_ref, b3_ref,
                      p_ref, gamma_ref, beta_ref,
                      wf1_ref, bf1_ref, wf2_ref, bf2_ref,
                      o_ref):
    # A_hat loaded once, resident in VMEM for all three layers (bf16).
    a = a_ref[...]

    def gcn(h, w_ref, b_ref):
        # feature transform in f32 (tiny), aggregation on the bf16 MXU path,
        # f32 accumulation; bias + ReLU in f32 on the VPU.
        xw = jnp.dot(h, w_ref[...], preferred_element_type=jnp.float32)
        agg = jnp.dot(a, xw.astype(jnp.bfloat16),
                      preferred_element_type=jnp.float32)
        return jnp.maximum(agg + b_ref[...], 0.0)

    h = gcn(x_ref[...], w1_ref, b1_ref)      # conv1 + ReLU
    h = gcn(h, w2_ref, b2_ref)                # conv2 + ReLU
    h = gcn(h, w3_ref, b3_ref)                # conv3 + ReLU

    # global_mean_pool as a matmul: [G, N] @ [N, HID_P] -> [G, HID_P]
    g = jnp.dot(p_ref[...], h, preferred_element_type=jnp.float32)

    # BatchNorm1d (training mode: per-feature batch stats over the graph axis)
    mean = jnp.mean(g, axis=0, keepdims=True)
    var = jnp.mean((g - mean) ** 2, axis=0, keepdims=True)
    gn = (g - mean) * jax.lax.rsqrt(var + 1e-5)
    gn = gn * gamma_ref[...] + beta_ref[...]

    # fc1 + ReLU
    hh = jnp.dot(gn, wf1_ref[...], preferred_element_type=jnp.float32) + bf1_ref[...]
    hh = jnp.maximum(hh, 0.0)

    # fc2 + log_softmax over the real classes only (padded lanes masked out)
    logits = jnp.dot(hh, wf2_ref[...], preferred_element_type=jnp.float32) + bf2_ref[...]
    col = jax.lax.broadcasted_iota(jnp.int32, logits.shape, dimension=1)
    logits = jnp.where(col < nout, logits, jnp.float32(-1e30))
    m = jnp.max(logits, axis=1, keepdims=True)
    z = logits - m
    lse = jnp.log(jnp.sum(jnp.exp(z), axis=1, keepdims=True))
    o_ref[...] = z - lse


def gcn_net_forward(x, a_hat, pool_mat, params, nout):
    """Full GcnNet forward; a_hat/pool_mat are precomputed graph operators."""
    n, ninp = x.shape
    g_cnt = pool_mat.shape[0]

    # Pad node features to the 128-lane width (params are pre-padded once).
    x_pad = jnp.zeros((n, HID_P), jnp.float32).at[:, :ninp].set(x)

    def full(shape):
        return pl.BlockSpec(shape, lambda i: (0, 0))

    # Advisory cost so XLA schedules surrounding ops sensibly.
    flops = (3 * (2 * n * HID_P * HID_P + 2 * n * n * HID_P)
             + 2 * g_cnt * n * HID_P
             + 2 * g_cnt * HID_P * F1_P
             + 2 * g_cnt * F1_P * C_P)
    bytes_acc = (a_hat.size * a_hat.dtype.itemsize
                 + x_pad.size * 4
                 + pool_mat.size * 4
                 + sum(int(v.size) * 4 for v in params.values())
                 + g_cnt * C_P * 4)

    out = pl.pallas_call(
        functools.partial(_fused_gcn_kernel, nout),
        out_shape=jax.ShapeDtypeStruct((g_cnt, C_P), jnp.float32),
        grid=(1,),
        in_specs=[
            full((n, n)),                                   # A_hat (bf16)
            full((n, HID_P)),                               # x (padded)
            full((HID_P, HID_P)), full((1, HID_P)),         # conv1 W, b
            full((HID_P, HID_P)), full((1, HID_P)),         # conv2 W, b
            full((HID_P, HID_P)), full((1, HID_P)),         # conv3 W, b
            full((g_cnt, n)),                               # pooling matrix
            full((1, HID_P)), full((1, HID_P)),             # BN gamma, beta
            full((HID_P, F1_P)), full((1, F1_P)),           # fc1 W, b
            full((F1_P, C_P)), full((1, C_P)),              # fc2 W, b
        ],
        out_specs=full((g_cnt, C_P)),
        compiler_params=pltpu.CompilerParams(
            dimension_semantics=("arbitrary",),
            vmem_limit_bytes=32 * 1024 * 1024),
        cost_estimate=pl.CostEstimate(
            flops=flops,
            transcendentals=2 * g_cnt * C_P,
            bytes_accessed=bytes_acc),
    )(a_hat, x_pad,
      params["w_c1"], params["b_c1"],
      params["w_c2"], params["b_c2"],
      params["w_c3"], params["b_c3"],
      pool_mat,
      params["bn_gamma"], params["bn_beta"],
      params["w_fc1"], params["b_fc1"],
      params["w_fc2"], params["b_fc2"])

    return out[:, :nout]


# ------------------------- graph-operator / param precompute -------------------------

def build_graph_operators(edge_index, num_nodes, batch, num_graphs):
    """One-time per-batch precompute (kept out of the per-forward path).

    A_hat = D^{-1/2} (A + I) D^{-1/2}, duplicate edges scatter-ADDed so message
    summation matches PyG GCNConv. Stored in bf16 (largest operand).
    P[g, n] = (batch[n] == g) / count[g] so global_mean_pool is a matmul.
    """
    src, dst = edge_index[0], edge_index[1]
    adj = jnp.zeros((num_nodes, num_nodes), jnp.float32).at[src, dst].add(1.0)
    a_tilde = adj + jnp.eye(num_nodes, dtype=jnp.float32)
    deg = jnp.sum(a_tilde, axis=1)
    dinv = jax.lax.rsqrt(deg)
    a_hat = (dinv[:, None] * a_tilde * dinv[None, :]).astype(jnp.bfloat16)

    onehot = (batch[None, :] == jnp.arange(num_graphs)[:, None]).astype(jnp.float32)
    counts = jnp.maximum(jnp.sum(onehot, axis=1, keepdims=True), 1.0)
    pool_mat = onehot / counts
    return a_hat, pool_mat


def pad_params(raw):
    """Zero-pad every weight/bias to 128-wide lane-dense shapes (done once)."""
    def pad_mat(w, rows, cols):
        return jnp.zeros((rows, cols), jnp.float32).at[:w.shape[0], :w.shape[1]].set(w)

    def pad_vec(b, cols):
        return jnp.zeros((1, cols), jnp.float32).at[0, :b.shape[0]].set(b)

    return {
        "w_c1": pad_mat(raw["w_c1"], HID_P, HID_P), "b_c1": pad_vec(raw["b_c1"], HID_P),
        "w_c2": pad_mat(raw["w_c2"], HID_P, HID_P), "b_c2": pad_vec(raw["b_c2"], HID_P),
        "w_c3": pad_mat(raw["w_c3"], HID_P, HID_P), "b_c3": pad_vec(raw["b_c3"], HID_P),
        "bn_gamma": pad_vec(raw["bn_gamma"], HID_P),
        "bn_beta": pad_vec(raw["bn_beta"], HID_P),
        "w_fc1": pad_mat(raw["w_fc1"], HID_P, F1_P), "b_fc1": pad_vec(raw["b_fc1"], F1_P),
        "w_fc2": pad_mat(raw["w_fc2"], F1_P, C_P),   "b_fc2": pad_vec(raw["b_fc2"], C_P),
    }


# ---------------------------------------- main ----------------------------------------

if __name__ == "__main__":
    # Sizes consistent with the module: ninp = 4 (superpixel intensity + pos + degree),
    # hidden = 64, fc1 -> 32, 10 classes, N = 64 nodes in G = 2 graphs.
    N, G, NINP, HID, F1, NOUT = 64, 2, 4, 64, 32, 10
    NODES_PER_GRAPH = N // G
    E_PER_GRAPH = 96

    key = jax.random.PRNGKey(0)
    keys = jax.random.split(key, 16)

    # Node features
    x = jax.random.normal(keys[0], (N, NINP), dtype=jnp.float32)

    # Deterministic random intra-graph edges (symmetrized, no self-loops).
    srcs, dsts = [], []
    for g in range(G):
        s = jax.random.randint(keys[1 + 2 * g], (E_PER_GRAPH,), 0, NODES_PER_GRAPH)
        off = jax.random.randint(keys[2 + 2 * g], (E_PER_GRAPH,), 1, NODES_PER_GRAPH)
        d = (s + off) % NODES_PER_GRAPH
        s = s + g * NODES_PER_GRAPH
        d = d + g * NODES_PER_GRAPH
        srcs += [s, d]
        dsts += [d, s]
    edge_index = jnp.stack([jnp.concatenate(srcs), jnp.concatenate(dsts)], axis=0)

    # batch vector: node -> graph id
    batch = jnp.repeat(jnp.arange(G, dtype=jnp.int32), NODES_PER_GRAPH)

    # Deterministic synthetic parameters (weights stored as [in, out]).
    def glorot(k, shape):
        fan_in, fan_out = shape
        scale = jnp.sqrt(2.0 / (fan_in + fan_out))
        return scale * jax.random.normal(k, shape, dtype=jnp.float32)

    raw_params = {
        "w_c1": glorot(keys[5], (NINP, HID)), "b_c1": jnp.zeros((HID,), jnp.float32),
        "w_c2": glorot(keys[6], (HID, HID)),  "b_c2": jnp.zeros((HID,), jnp.float32),
        "w_c3": glorot(keys[7], (HID, HID)),  "b_c3": jnp.zeros((HID,), jnp.float32),
        "bn_gamma": jnp.ones((HID,), jnp.float32),
        "bn_beta": jnp.zeros((HID,), jnp.float32),
        "w_fc1": glorot(keys[8], (HID, F1)),
        "b_fc1": 0.01 * jax.random.normal(keys[9], (F1,), dtype=jnp.float32),
        "w_fc2": glorot(keys[10], (F1, NOUT)),
        "b_fc2": 0.01 * jax.random.normal(keys[11], (NOUT,), dtype=jnp.float32),
    }

    # One-time precompute (kept out of the per-forward path).
    params = pad_params(raw_params)
    a_hat, pool_mat = build_graph_operators(edge_index, N, batch, G)

    fwd = jax.jit(functools.partial(gcn_net_forward, nout=NOUT))
    out = fwd(x, a_hat, pool_mat, params)
    out = jax.block_until_ready(out)

    assert out.shape == (G, NOUT)
    # log_softmax rows should sum (in prob space) to ~1
    assert jnp.allclose(jnp.exp(out).sum(axis=1), 1.0, atol=1e-4)
    print("KERNEL_OK")
</pallas_src>

<mosaic_0001>
module attributes {stable_mosaic.version = 11 : i64} {
  func.func @_fused_gcn_kernel(%arg0: i32, %arg1: memref<64x64xbf16, #tpu.memory_space<vmem>>, %arg2: memref<64x128xf32, #tpu.memory_space<vmem>>, %arg3: memref<128x128xf32, #tpu.memory_space<vmem>>, %arg4: memref<1x128xf32, #tpu.memory_space<vmem>>, %arg5: memref<128x128xf32, #tpu.memory_space<vmem>>, %arg6: memref<1x128xf32, #tpu.memory_space<vmem>>, %arg7: memref<128x128xf32, #tpu.memory_space<vmem>>, %arg8: memref<1x128xf32, #tpu.memory_space<vmem>>, %arg9: memref<2x64xf32, #tpu.memory_space<vmem>>, %arg10: memref<1x128xf32, #tpu.memory_space<vmem>>, %arg11: memref<1x128xf32, #tpu.memory_space<vmem>>, %arg12: memref<128x128xf32, #tpu.memory_space<vmem>>, %arg13: memref<1x128xf32, #tpu.memory_space<vmem>>, %arg14: memref<128x128xf32, #tpu.memory_space<vmem>>, %arg15: memref<1x128xf32, #tpu.memory_space<vmem>>, %arg16: memref<2x128xf32, #tpu.memory_space<vmem>>) attributes {dimension_semantics = [#tpu.dimension_semantics<arbitrary>], iteration_bounds = array<i64: 1>, scalar_prefetch = 0 : i64, scratch_operands = 0 : i64, tpu.core_type = #tpu.core_type<tc>, window_params = [{pipeline_mode = #tpu.pipeline_mode<synchronous>, transform_indices = @transform_0, window_bounds = array<i64: 64, 64>}, {pipeline_mode = #tpu.pipeline_mode<synchronous>, transform_indices = @transform_1, window_bounds = array<i64: 64, 128>}, {pipeline_mode = #tpu.pipeline_mode<synchronous>, transform_indices = @transform_2, window_bounds = array<i64: 128, 128>}, {pipeline_mode = #tpu.pipeline_mode<synchronous>, transform_indices = @transform_3, window_bounds = array<i64: 1, 128>}, {pipeline_mode = #tpu.pipeline_mode<synchronous>, transform_indices = @transform_4, window_bounds = array<i64: 128, 128>}, {pipeline_mode = #tpu.pipeline_mode<synchronous>, transform_indices = @transform_5, window_bounds = array<i64: 1, 128>}, {pipeline_mode = #tpu.pipeline_mode<synchronous>, transform_indices = @transform_6, window_bounds = array<i64: 128, 128>}, {pipeline_mode = #tpu.pipeline_mode<synchronous>, transform_indices = @transform_7, window_bounds = array<i64: 1, 128>}, {pipeline_mode = #tpu.pipeline_mode<synchronous>, transform_indices = @transform_8, window_bounds = array<i64: 2, 64>}, {pipeline_mode = #tpu.pipeline_mode<synchronous>, transform_indices = @transform_9, window_bounds = array<i64: 1, 128>}, {pipeline_mode = #tpu.pipeline_mode<synchronous>, transform_indices = @transform_10, window_bounds = array<i64: 1, 128>}, {pipeline_mode = #tpu.pipeline_mode<synchronous>, transform_indices = @transform_11, window_bounds = array<i64: 128, 128>}, {pipeline_mode = #tpu.pipeline_mode<synchronous>, transform_indices = @transform_12, window_bounds = array<i64: 1, 128>}, {pipeline_mode = #tpu.pipeline_mode<synchronous>, transform_indices = @transform_13, window_bounds = array<i64: 128, 128>}, {pipeline_mode = #tpu.pipeline_mode<synchronous>, transform_indices = @transform_14, window_bounds = array<i64: 1, 128>}, {pipeline_mode = #tpu.pipeline_mode<synchronous>, transform_indices = @transform_15, window_bounds = array<i64: 2, 128>}]} {
    %c0 = arith.constant 0 : index
    %c0_0 = arith.constant 0 : index
    %0 = vector.load %arg1[%c0, %c0_0] : memref<64x64xbf16, #tpu.memory_space<vmem>>, vector<64x64xbf16>
    %c0_1 = arith.constant 0 : index
    %c0_2 = arith.constant 0 : index
    %1 = vector.load %arg2[%c0_1, %c0_2] : memref<64x128xf32, #tpu.memory_space<vmem>>, vector<64x128xf32>
    %c0_3 = arith.constant 0 : index
    %c0_4 = arith.constant 0 : index
    %2 = vector.load %arg3[%c0_3, %c0_4] : memref<128x128xf32, #tpu.memory_space<vmem>>, vector<128x128xf32>
    %cst = arith.constant dense<0.000000e+00> : vector<64x128xf32>
    %3 = tpu.matmul %1, %2, %cst {dimension_numbers = #tpu.dot_dimension_numbers<[1], [0], [0], [1], [0, 0, 1, 1], [], []>} : vector<64x128xf32>, vector<128x128xf32>, vector<64x128xf32> -> vector<64x128xf32>
    %4 = arith.truncf %3 : vector<64x128xf32> to vector<64x128xbf16>
    %cst_5 = arith.constant dense<0.000000e+00> : vector<64x128xf32>
    %5 = tpu.matmul %0, %4, %cst_5 {dimension_numbers = #tpu.dot_dimension_numbers<[1], [0], [0], [1], [0, 0, 1, 1], [], []>} : vector<64x64xbf16>, vector<64x128xbf16>, vector<64x128xf32> -> vector<64x128xf32>
    %c0_6 = arith.constant 0 : index
    %c0_7 = arith.constant 0 : index
    %6 = vector.load %arg4[%c0_6, %c0_7] : memref<1x128xf32, #tpu.memory_space<vmem>>, vector<1x128xf32>
    %7 = vector.broadcast %6 : vector<1x128xf32> to vector<64x128xf32>
    %8 = arith.addf %5, %7 : vector<64x128xf32>
    %cst_8 = arith.constant 0.000000e+00 : f32
    %9 = vector.broadcast %cst_8 : f32 to vector<64x128xf32>
    %10 = arith.maximumf %8, %9 : vector<64x128xf32>
    %c0_9 = arith.constant 0 : index
    %c0_10 = arith.constant 0 : index
    %11 = vector.load %arg5[%c0_9, %c0_10] : memref<128x128xf32, #tpu.memory_space<vmem>>, vector<128x128xf32>
    %cst_11 = arith.constant dense<0.000000e+00> : vector<64x128xf32>
    %12 = tpu.matmul %10, %11, %cst_11 {dimension_numbers = #tpu.dot_dimension_numbers<[1], [0], [0], [1], [0, 0, 1, 1], [], []>} : vector<64x128xf32>, vector<128x128xf32>, vector<64x128xf32> -> vector<64x128xf32>
    %13 = arith.truncf %12 : vector<64x128xf32> to vector<64x128xbf16>
    %cst_12 = arith.constant dense<0.000000e+00> : vector<64x128xf32>
    %14 = tpu.matmul %0, %13, %cst_12 {dimension_numbers = #tpu.dot_dimension_numbers<[1], [0], [0], [1], [0, 0, 1, 1], [], []>} : vector<64x64xbf16>, vector<64x128xbf16>, vector<64x128xf32> -> vector<64x128xf32>
    %c0_13 = arith.constant 0 : index
    %c0_14 = arith.constant 0 : index
    %15 = vector.load %arg6[%c0_13, %c0_14] : memref<1x128xf32, #tpu.memory_space<vmem>>, vector<1x128xf32>
    %16 = vector.broadcast %15 : vector<1x128xf32> to vector<64x128xf32>
    %17 = arith.addf %14, %16 : vector<64x128xf32>
    %cst_15 = arith.constant 0.000000e+00 : f32
    %18 = vector.broadcast %cst_15 : f32 to vector<64x128xf32>
    %19 = arith.maximumf %17, %18 : vector<64x128xf32>
    %c0_16 = arith.constant 0 : index
    %c0_17 = arith.constant 0 : index
    %20 = vector.load %arg7[%c0_16, %c0_17] : memref<128x128xf32, #tpu.memory_space<vmem>>, vector<128x128xf32>
    %cst_18 = arith.constant dense<0.000000e+00> : vector<64x128xf32>
    %21 = tpu.matmul %19, %20, %cst_18 {dimension_numbers = #tpu.dot_dimension_numbers<[1], [0], [0], [1], [0, 0, 1, 1], [], []>} : vector<64x128xf32>, vector<128x128xf32>, vector<64x128xf32> -> vector<64x128xf32>
    %22 = arith.truncf %21 : vector<64x128xf32> to vector<64x128xbf16>
    %cst_19 = arith.constant dense<0.000000e+00> : vector<64x128xf32>
    %23 = tpu.matmul %0, %22, %cst_19 {dimension_numbers = #tpu.dot_dimension_numbers<[1], [0], [0], [1], [0, 0, 1, 1], [], []>} : vector<64x64xbf16>, vector<64x128xbf16>, vector<64x128xf32> -> vector<64x128xf32>
    %c0_20 = arith.constant 0 : index
    %c0_21 = arith.constant 0 : index
    %24 = vector.load %arg8[%c0_20, %c0_21] : memref<1x128xf32, #tpu.memory_space<vmem>>, vector<1x128xf32>
    %25 = vector.broadcast %24 : vector<1x128xf32> to vector<64x128xf32>
    %26 = arith.addf %23, %25 : vector<64x128xf32>
    %cst_22 = arith.constant 0.000000e+00 : f32
    %27 = vector.broadcast %cst_22 : f32 to vector<64x128xf32>
    %28 = arith.maximumf %26, %27 : vector<64x128xf32>
    %c0_23 = arith.constant 0 : index
    %c0_24 = arith.constant 0 : index
    %29 = vector.load %arg9[%c0_23, %c0_24] : memref<2x64xf32, #tpu.memory_space<vmem>>, vector<2x64xf32>
    %cst_25 = arith.constant dense<0.000000e+00> : vector<2x128xf32>
    %30 = tpu.matmul %29, %28, %cst_25 {dimension_numbers = #tpu.dot_dimension_numbers<[1], [0], [0], [1], [0, 0, 1, 1], [], []>} : vector<2x64xf32>, vector<64x128xf32>, vector<2x128xf32> -> vector<2x128xf32>
    %cst_26 = arith.constant dense<0.000000e+00> : vector<128xf32>
    %31 = vector.multi_reduction <add>, %30, %cst_26 [0] : vector<2x128xf32> to vector<128xf32>
    %32 = vector.shape_cast %31 : vector<128xf32> to vector<1x128xf32>
    %cst_27 = arith.constant 2.000000e+00 : f32
    %33 = vector.broadcast %cst_27 : f32 to vector<1x128xf32>
    %34 = arith.divf %32, %33 : vector<1x128xf32>
    %35 = vector.broadcast %34 : vector<1x128xf32> to vector<2x128xf32>
    %36 = arith.subf %30, %35 : vector<2x128xf32>
    %37 = arith.mulf %36, %36 : vector<2x128xf32>
    %cst_28 = arith.constant dense<0.000000e+00> : vector<128xf32>
    %38 = vector.multi_reduction <add>, %37, %cst_28 [0] : vector<2x128xf32> to vector<128xf32>
    %39 = vector.shape_cast %38 : vector<128xf32> to vector<1x128xf32>
    %cst_29 = arith.constant 2.000000e+00 : f32
    %40 = vector.broadcast %cst_29 : f32 to vector<1x128xf32>
    %41 = arith.divf %39, %40 : vector<1x128xf32>
    %42 = vector.broadcast %34 : vector<1x128xf32> to vector<2x128xf32>
    %43 = arith.subf %30, %42 : vector<2x128xf32>
    %cst_30 = arith.constant 9.99999974E-6 : f32
    %44 = vector.broadcast %cst_30 : f32 to vector<1x128xf32>
    %45 = arith.addf %41, %44 : vector<1x128xf32>
    %46 = math.rsqrt %45 : vector<1x128xf32>
    %47 = vector.broadcast %46 : vector<1x128xf32> to vector<2x128xf32>
    %48 = arith.mulf %43, %47 : vector<2x128xf32>
    %c0_31 = arith.constant 0 : index
    %c0_32 = arith.constant 0 : index
    %49 = vector.load %arg10[%c0_31, %c0_32] : memref<1x128xf32, #tpu.memory_space<vmem>>, vector<1x128xf32>
    %50 = vector.broadcast %49 : vector<1x128xf32> to vector<2x128xf32>
    %51 = arith.mulf %48, %50 : vector<2x128xf32>
    %c0_33 = arith.constant 0 : index
    %c0_34 = arith.constant 0 : index
    %52 = vector.load %arg11[%c0_33, %c0_34] : memref<1x128xf32, #tpu.memory_space<vmem>>, vector<1x128xf32>
    %53 = vector.broadcast %52 : vector<1x128xf32> to vector<2x128xf32>
    %54 = arith.addf %51, %53 : vector<2x128xf32>
    %c0_35 = arith.constant 0 : index
    %c0_36 = arith.constant 0 : index
    %55 = vector.load %arg12[%c0_35, %c0_36] : memref<128x128xf32, #tpu.memory_space<vmem>>, vector<128x128xf32>
    %cst_37 = arith.constant dense<0.000000e+00> : vector<2x128xf32>
    %56 = tpu.matmul %54, %55, %cst_37 {dimension_numbers = #tpu.dot_dimension_numbers<[1], [0], [0], [1], [0, 0, 1, 1], [], []>} : vector<2x128xf32>, vector<128x128xf32>, vector<2x128xf32> -> vector<2x128xf32>
    %c0_38 = arith.constant 0 : index
    %c0_39 = arith.constant 0 : index
    %57 = vector.load %arg13[%c0_38, %c0_39] : memref<1x128xf32, #tpu.memory_space<vmem>>, vector<1x128xf32>
    %58 = vector.broadcast %57 : vector<1x128xf32> to vector<2x128xf32>
    %59 = arith.addf %56, %58 : vector<2x128xf32>
    %cst_40 = arith.constant 0.000000e+00 : f32
    %60 = vector.broadcast %cst_40 : f32 to vector<2x128xf32>
    %61 = arith.maximumf %59, %60 : vector<2x128xf32>
    %c0_41 = arith.constant 0 : index
    %c0_42 = arith.constant 0 : index
    %62 = vector.load %arg14[%c0_41, %c0_42] : memref<128x128xf32, #tpu.memory_space<vmem>>, vector<128x128xf32>
    %cst_43 = arith.constant dense<0.000000e+00> : vector<2x128xf32>
    %63 = tpu.matmul %61, %62, %cst_43 {dimension_numbers = #tpu.dot_dimension_numbers<[1], [0], [0], [1], [0, 0, 1, 1], [], []>} : vector<2x128xf32>, vector<128x128xf32>, vector<2x128xf32> -> vector<2x128xf32>
    %c0_44 = arith.constant 0 : index
    %c0_45 = arith.constant 0 : index
    %64 = vector.load %arg15[%c0_44, %c0_45] : memref<1x128xf32, #tpu.memory_space<vmem>>, vector<1x128xf32>
    %65 = vector.broadcast %64 : vector<1x128xf32> to vector<2x128xf32>
    %66 = arith.addf %63, %65 : vector<2x128xf32>
    %67 = tpu.iota {dimensions = array<i32: 1>} : vector<2x128xi32>
    %c10_i32 = arith.constant 10 : i32
    %68 = vector.broadcast %c10_i32 : i32 to vector<2x128xi32>
    %69 = arith.cmpi slt, %67, %68 : vector<2x128xi32>
    %cst_46 = arith.constant -1.000000e+30 : f32
    %70 = vector.broadcast %cst_46 : f32 to vector<2x128xf32>
    %71 = arith.select %69, %66, %70 : vector<2x128xi1>, vector<2x128xf32>
    %cst_47 = arith.constant dense<0xFF800000> : vector<2xf32>
    %72 = vector.multi_reduction <maximumf>, %71, %cst_47 [1] : vector<2x128xf32> to vector<2xf32>
    %73 = vector.shape_cast %72 : vector<2xf32> to vector<2x1xf32>
    %74 = vector.broadcast %73 : vector<2x1xf32> to vector<2x128xf32>
    %75 = arith.subf %71, %74 : vector<2x128xf32>
    %76 = math.exp %75 : vector<2x128xf32>
    %cst_48 = arith.constant dense<0.000000e+00> : vector<2xf32>
    %77 = vector.multi_reduction <add>, %76, %cst_48 [1] : vector<2x128xf32> to vector<2xf32>
    %78 = vector.shape_cast %77 : vector<2xf32> to vector<2x1xf32>
    %79 = math.log %78 : vector<2x1xf32>
    %80 = vector.broadcast %79 : vector<2x1xf32> to vector<2x128xf32>
    %81 = arith.subf %75, %80 : vector<2x128xf32>
    %c0_49 = arith.constant 0 : index
    %c0_50 = arith.constant 0 : index
    %82 = vector.load %arg16[%c0_49, %c0_50] : memref<2x128xf32, #tpu.memory_space<vmem>>, vector<2x128xf32>
    tpu.vector_store %arg16[%c0_49, %c0_50], %81 {strides = array<i32>} : memref<2x128xf32, #tpu.memory_space<vmem>>, vector<2x128xf32>,
    return
  }
  func.func @transform_0(%arg0: i32) -> (i32, i32) {
    %c0_i32 = arith.constant 0 : i32
    %c0_i32_0 = arith.constant 0 : i32
    %c0_i32_1 = arith.constant 0 : i32
    return %c0_i32, %c0_i32_0 : i32, i32
  }
  func.func @transform_1(%arg0: i32) -> (i32, i32) {
    %c0_i32 = arith.constant 0 : i32
    %c0_i32_0 = arith.constant 0 : i32
    %c0_i32_1 = arith.constant 0 : i32
    return %c0_i32, %c0_i32_0 : i32, i32
  }
  func.func @transform_2(%arg0: i32) -> (i32, i32) {
    %c0_i32 = arith.constant 0 : i32
    %c0_i32_0 = arith.constant 0 : i32
    %c0_i32_1 = arith.constant 0 : i32
    return %c0_i32, %c0_i32_0 : i32, i32
  }
  func.func @transform_3(%arg0: i32) -> (i32, i32) {
    %c0_i32 = arith.constant 0 : i32
    %c0_i32_0 = arith.constant 0 : i32
    %c0_i32_1 = arith.constant 0 : i32
    return %c0_i32, %c0_i32_0 : i32, i32
  }
  func.func @transform_4(%arg0: i32) -> (i32, i32) {
    %c0_i32 = arith.constant 0 : i32
    %c0_i32_0 = arith.constant 0 : i32
    %c0_i32_1 = arith.constant 0 : i32
    return %c0_i32, %c0_i32_0 : i32, i32
  }
  func.func @transform_5(%arg0: i32) -> (i32, i32) {
    %c0_i32 = arith.constant 0 : i32
    %c0_i32_0 = arith.constant 0 : i32
    %c0_i32_1 = arith.constant 0 : i32
    return %c0_i32, %c0_i32_0 : i32, i32
  }
  func.func @transform_6(%arg0: i32) -> (i32, i32) {
    %c0_i32 = arith.constant 0 : i32
    %c0_i32_0 = arith.constant 0 : i32
    %c0_i32_1 = arith.constant 0 : i32
    return %c0_i32, %c0_i32_0 : i32, i32
  }
  func.func @transform_7(%arg0: i32) -> (i32, i32) {
    %c0_i32 = arith.constant 0 : i32
    %c0_i32_0 = arith.constant 0 : i32
    %c0_i32_1 = arith.constant 0 : i32
    return %c0_i32, %c0_i32_0 : i32, i32
  }
  func.func @transform_8(%arg0: i32) -> (i32, i32) {
    %c0_i32 = arith.constant 0 : i32
    %c0_i32_0 = arith.constant 0 : i32
    %c0_i32_1 = arith.constant 0 : i32
    return %c0_i32, %c0_i32_0 : i32, i32
  }
  func.func @transform_9(%arg0: i32) -> (i32, i32) {
    %c0_i32 = arith.constant 0 : i32
    %c0_i32_0 = arith.constant 0 : i32
    %c0_i32_1 = arith.constant 0 : i32
    return %c0_i32, %c0_i32_0 : i32, i32
  }
  func.func @transform_10(%arg0: i32) -> (i32, i32) {
    %c0_i32 = arith.constant 0 : i32
    %c0_i32_0 = arith.constant 0 : i32
    %c0_i32_1 = arith.constant 0 : i32
    return %c0_i32, %c0_i32_0 : i32, i32
  }
  func.func @transform_11(%arg0: i32) -> (i32, i32) {
    %c0_i32 = arith.constant 0 : i32
    %c0_i32_0 = arith.constant 0 : i32
    %c0_i32_1 = arith.constant 0 : i32
    return %c0_i32, %c0_i32_0 : i32, i32
  }
  func.func @transform_12(%arg0: i32) -> (i32, i32) {
    %c0_i32 = arith.constant 0 : i32
    %c0_i32_0 = arith.constant 0 : i32
    %c0_i32_1 = arith.constant 0 : i32
    return %c0_i32, %c0_i32_0 : i32, i32
  }
  func.func @transform_13(%arg0: i32) -> (i32, i32) {
    %c0_i32 = arith.constant 0 : i32
    %c0_i32_0 = arith.constant 0 : i32
    %c0_i32_1 = arith.constant 0 : i32
    return %c0_i32, %c0_i32_0 : i32, i32
  }
  func.func @transform_14(%arg0: i32) -> (i32, i32) {
    %c0_i32 = arith.constant 0 : i32
    %c0_i32_0 = arith.constant 0 : i32
    %c0_i32_1 = arith.constant 0 : i32
    return %c0_i32, %c0_i32_0 : i32, i32
  }
  func.func @transform_15(%arg0: i32) -> (i32, i32) {
    %c0_i32 = arith.constant 0 : i32
    %c0_i32_0 = arith.constant 0 : i32
    %c0_i32_1 = arith.constant 0 : i32
    return %c0_i32, %c0_i32_0 : i32, i32
  }
}

</mosaic_0001>

<llo_original>
// kernel: gcn_net_forward.1
$region0: #{gcn_net_forward.1}
  #allocation0 [shape = 'u32[]', space=smem, size = 0x4, offset = 0x4, fixed_abs, tag = 'smem constant byte address 0x4 - core index']
  #allocation1 [shape = 'u32[144,128]{1,0:T(1,128)}', space=vmem, size = 0x12000, scoped, tag = 'internal scratch']
  %s0 = inlined_call_operand.vmem [shape: bf16[64,64], index: 0, kind: input, shape index: {}]
  %s1 = inlined_call_operand.vmem [shape: f32[64,128], index: 1, kind: input, shape index: {}]
  %s2 = inlined_call_operand.vmem [shape: f32[128,128], index: 2, kind: input, shape index: {}]
  %s3 = inlined_call_operand.vmem [shape: f32[1,128], index: 3, kind: input, shape index: {}]
  %s4 = inlined_call_operand.vmem [shape: f32[128,128], index: 4, kind: input, shape index: {}]
  %s5 = inlined_call_operand.vmem [shape: f32[1,128], index: 5, kind: input, shape index: {}]
  %s6 = inlined_call_operand.hbm [shape: f32[128,128], index: 6, kind: input, shape index: {}]
  %s7 = inlined_call_operand.vmem [shape: f32[1,128], index: 7, kind: input, shape index: {}]
  %s8 = inlined_call_operand.vmem [shape: f32[2,64], index: 8, kind: input, shape index: {}]
  %s9 = inlined_call_operand.vmem [shape: f32[1,128], index: 9, kind: input, shape index: {}]
  %s10 = inlined_call_operand.vmem [shape: f32[1,128], index: 10, kind: input, shape index: {}]
  %s11 = inlined_call_operand.hbm [shape: f32[128,128], index: 11, kind: input, shape index: {}]
  %s12 = inlined_call_operand.vmem [shape: f32[1,128], index: 12, kind: input, shape index: {}]
  %s13 = inlined_call_operand.hbm [shape: f32[128,128], index: 13, kind: input, shape index: {}]
  %s14 = inlined_call_operand.vmem [shape: f32[1,128], index: 14, kind: input, shape index: {}]
  %s15 = inlined_call_operand.hbm [shape: f32[2,128], index: 15, kind: output, shape index: {}]
  %s16 = sld [smem:[#allocation0]]
  $region82: #{gcn_net_forward.1} parent=0
    _
  %s18 = ssub.s32 1, %s16
  %s19 = scalar_select 0, %s18, %s16
  $region1: #{gcn_net_forward.1} parent=0
    #allocation2 [shape = 'u8[65536]{0}', space=vmem, size = 0x10000, scoped, tag = 'input window, operand 6, single buffered']
    #allocation3 [shape = 's32[1]{0}', space=sflag, size = 0x4, scoped, tag = 'scoped memory for gcn_net_forward.1']
    #allocation4 [shape = 's32[1]{0}', space=sflag, size = 0x4, scoped, tag = 'scoped memory for gcn_net_forward.1']
    #allocation5 [shape = 'u8[65536]{0}', space=vmem, size = 0x10000, scoped, tag = 'input window, operand 11, single buffered']
    #allocation6 [shape = 's32[1]{0}', space=sflag, size = 0x4, scoped, tag = 'scoped memory for gcn_net_forward.1']
    #allocation7 [shape = 'u8[65536]{0}', space=vmem, size = 0x10000, scoped, tag = 'input window, operand 13, single buffered']
    #allocation8 [shape = 'u8[1024]{0}', space=vmem, size = 0x400, scoped, tag = 'output window, operand 0, single buffered']
    %20 = vsyncpa [#allocation3], 0
    %21 = vsyncpa [#allocation6], 0
    %22 = vsyncpa [#allocation4], 0
    // Predicated region
    $region2: #{gcn_net_forward.1} parent=1 // pred_check
      _
    $region3: #{gcn_net_forward.1} parent=1 // pred_check_branch
      %24 = sbr.rel (0) target = $region5
    $region4: #{gcn_net_forward.1} parent=1 // pred_region
      _
    $region5: #{gcn_net_forward.1} parent=1 // pred_fallthru
      _
    // Predicated region
    $region6: #{gcn_net_forward.1} parent=1 // pred_check
      _
    $region7: #{gcn_net_forward.1} parent=1 // pred_check_branch
      %26 = sbr.rel (0) target = $region9
    $region8: #{gcn_net_forward.1} parent=1 // pred_region
      _
    $region9: #{gcn_net_forward.1} parent=1 // pred_fallthru
      _
    // Predicated region
    $region10: #{gcn_net_forward.1} parent=1 // pred_check
      _
    $region11: #{gcn_net_forward.1} parent=1 // pred_check_branch
      %28 = sbr.rel (0) target = $region13
    $region12: #{gcn_net_forward.1} parent=1 // pred_region
      _
    $region13: #{gcn_net_forward.1} parent=1 // pred_fallthru
      _
    // Predicated region
    $region14: #{gcn_net_forward.1} parent=1 // pred_check
      _
    $region15: #{gcn_net_forward.1} parent=1 // pred_check_branch
      %30 = sbr.rel (0) target = $region17
    $region16: #{gcn_net_forward.1} parent=1 // pred_region
      _
    $region17: #{gcn_net_forward.1} parent=1 // pred_fallthru
      _
    // Predicated region
    $region18: #{gcn_net_forward.1} parent=1 // pred_check
      _
    $region19: #{gcn_net_forward.1} parent=1 // pred_check_branch
      %32 = sbr.rel (0) target = $region21
    $region20: #{gcn_net_forward.1} parent=1 // pred_region
      _
    $region21: #{gcn_net_forward.1} parent=1 // pred_fallthru
      _
    // Predicated region
    $region22: #{gcn_net_forward.1} parent=1 // pred_check
      _
    $region23: #{gcn_net_forward.1} parent=1 // pred_check_branch
      %34 = sbr.rel (0) target = $region25
    $region24: #{gcn_net_forward.1} parent=1 // pred_region
      _
    $region25: #{gcn_net_forward.1} parent=1 // pred_fallthru
      _
    // Predicated region
    $region26: #{gcn_net_forward.1} parent=1 // pred_check
      _
    $region27: #{gcn_net_forward.1} parent=1 // pred_check_branch
      %36 = sbr.rel (0) target = $region29
    $region28: #{gcn_net_forward.1} parent=1 // pred_region
      %s38 = ssub.s32 2048, 2048
      %39 = vsyncadd [#allocation3], %s38
      %s40 = sshll.u32 [#allocation2], 4
      %s41 = int_to_ptr.vmem [resolvable:$true] %s40
      %46 = dma.hbm_to_vmem [thread:$0]  %s6, 2048, %s41, [#allocation3], 128, 128, 8
    $region29: #{gcn_net_forward.1} parent=1 // pred_fallthru
      _
    // Predicated region
    $region30: #{gcn_net_forward.1} parent=1 // pred_check
      _
    $region31: #{gcn_net_forward.1} parent=1 // pred_check_branch
      %48 = sbr.rel (0) target = $region33
    $region32: #{gcn_net_forward.1} parent=1 // pred_region
      _
    $region33: #{gcn_net_forward.1} parent=1 // pred_fallthru
      _
    // Predicated region
    $region34: #{gcn_net_forward.1} parent=1 // pred_check
      _
    $region35: #{gcn_net_forward.1} parent=1 // pred_check_branch
      %50 = sbr.rel (0) target = $region37
    $region36: #{gcn_net_forward.1} parent=1 // pred_region
      _
    $region37: #{gcn_net_forward.1} parent=1 // pred_fallthru
      _
    // Predicated region
    $region38: #{gcn_net_forward.1} parent=1 // pred_check
      _
    $region39: #{gcn_net_forward.1} parent=1 // pred_check_branch
      %52 = sbr.rel (0) target = $region41
    $region40: #{gcn_net_forward.1} parent=1 // pred_region
      _
    $region41: #{gcn_net_forward.1} parent=1 // pred_fallthru
      _
    // Predicated region
    $region42: #{gcn_net_forward.1} parent=1 // pred_check
      _
    $region43: #{gcn_net_forward.1} parent=1 // pred_check_branch
      %54 = sbr.rel (0) target = $region45
    $region44: #{gcn_net_forward.1} parent=1 // pred_region
      _
    $region45: #{gcn_net_forward.1} parent=1 // pred_fallthru
      _
    // Predicated region
    $region46: #{gcn_net_forward.1} parent=1 // pred_check
      _
    $region47: #{gcn_net_forward.1} parent=1 // pred_check_branch
      %56 = sbr.rel (0) target = $region49
    $region48: #{gcn_net_forward.1} parent=1 // pred_region
      %s58 = ssub.s32 2048, 2048
      %59 = vsyncadd [#allocation6], %s58
      %s60 = sshll.u32 [#allocation5], 4
      %s61 = int_to_ptr.vmem [resolvable:$true] %s60
      %66 = dma.hbm_to_vmem [thread:$0]  %s11, 2048, %s61, [#allocation6], 128, 128, 8
    $region49: #{gcn_net_forward.1} parent=1 // pred_fallthru
      _
    // Predicated region
    $region50: #{gcn_net_forward.1} parent=1 // pred_check
      _
    $region51: #{gcn_net_forward.1} parent=1 // pred_check_branch
      %68 = sbr.rel (0) target = $region53
    $region52: #{gcn_net_forward.1} parent=1 // pred_region
      _
    $region53: #{gcn_net_forward.1} parent=1 // pred_fallthru
      _
    // Predicated region
    $region54: #{gcn_net_forward.1} parent=1 // pred_check
      _
    $region55: #{gcn_net_forward.1} parent=1 // pred_check_branch
      %70 = sbr.rel (0) target = $region57
    $region56: #{gcn_net_forward.1} parent=1 // pred_region
      %s72 = ssub.s32 2048, 2048
      %73 = vsyncadd [#allocation6], %s72
      %s74 = sshll.u32 [#allocation7], 4
      %s75 = int_to_ptr.vmem [resolvable:$true] %s74
      %80 = dma.hbm_to_vmem [thread:$0]  %s13, 2048, %s75, [#allocation6], 128, 128, 8
    $region57: #{gcn_net_forward.1} parent=1 // pred_fallthru
      _
    // Predicated region
    $region58: #{gcn_net_forward.1} parent=1 // pred_check
      _
    $region59: #{gcn_net_forward.1} parent=1 // pred_check_branch
      %82 = sbr.rel (0) target = $region61
    $region60: #{gcn_net_forward.1} parent=1 // pred_region
      _
    $region61: #{gcn_net_forward.1} parent=1 // pred_fallthru
      _
    // Predicated region
    $region62: #{gcn_net_forward.1} parent=1 // pred_check
      _
    $region63: #{gcn_net_forward.1} parent=1 // pred_check_branch
      %84 = sbr.rel (0) target = $region65
    $region64: #{gcn_net_forward.1} parent=1 // pred_region
      %85 = dma.done [#allocation3], 2048
    $region65: #{gcn_net_forward.1} parent=1 // pred_fallthru
      _
    // Predicated region
    $region66: #{gcn_net_forward.1} parent=1 // pred_check
      _
    $region67: #{gcn_net_forward.1} parent=1 // pred_check_branch
      %87 = sbr.rel (0) target = $region69
    $region68: #{gcn_net_forward.1} parent=1 // pred_region
      %88 = dma.done [#allocation6], 2048
    $region69: #{gcn_net_forward.1} parent=1 // pred_fallthru
      _
    // Predicated region
    $region70: #{gcn_net_forward.1} parent=1 // pred_check
      _
    $region71: #{gcn_net_forward.1} parent=1 // pred_check_branch
      %90 = sbr.rel (0) target = $region73
    $region72: #{gcn_net_forward.1} parent=1 // pred_region
      %91 = dma.done [#allocation6], 2048
    $region73: #{gcn_net_forward.1} parent=1 // pred_fallthru
      _
    %v93 = vld [vmem:[%s0] sm:$0xf]
    %v94 = vld [vmem:[%s0 + $0x4] sm:$0xf]
    %v95 = vld [vmem:[%s0 + $0x8] sm:$0xf]
    %v96 = vld [vmem:[%s0 + $0xc] sm:$0xf]
    %v97 = vld [vmem:[%s0 + $0x10] sm:$0xf]
    %v98 = vld [vmem:[%s0 + $0x14] sm:$0xf]
    %v99 = vld [vmem:[%s0 + $0x18] sm:$0xf]
    %v100 = vld [vmem:[%s0 + $0x1c] sm:$0xf]
    %v101 = vld [vmem:[%s1] sm:$0xff]
    %v102 = vld [vmem:[%s1 + $0x8] sm:$0xff]
    %v103 = vld [vmem:[%s1 + $0x10] sm:$0xff]
    %v104 = vld [vmem:[%s1 + $0x18] sm:$0xff]
    %v105 = vld [vmem:[%s1 + $0x20] sm:$0xff]
    %v106 = vld [vmem:[%s1 + $0x28] sm:$0xff]
    %v107 = vld [vmem:[%s1 + $0x30] sm:$0xff]
    %v108 = vld [vmem:[%s1 + $0x38] sm:$0xff]
    %v109 = vld [vmem:[%s2] sm:$0xff]
    %v110 = vld [vmem:[%s2 + $0x8] sm:$0xff]
    %v111 = vld [vmem:[%s2 + $0x10] sm:$0xff]
    %v112 = vld [vmem:[%s2 + $0x18] sm:$0xff]
    %v113 = vld [vmem:[%s2 + $0x20] sm:$0xff]
    %v114 = vld [vmem:[%s2 + $0x28] sm:$0xff]
    %v115 = vld [vmem:[%s2 + $0x30] sm:$0xff]
    %v116 = vld [vmem:[%s2 + $0x38] sm:$0xff]
    %v117 = vld [vmem:[%s2 + $0x40] sm:$0xff]
    %v118 = vld [vmem:[%s2 + $0x48] sm:$0xff]
    %v119 = vld [vmem:[%s2 + $0x50] sm:$0xff]
    %v120 = vld [vmem:[%s2 + $0x58] sm:$0xff]
    %v121 = vld [vmem:[%s2 + $0x60] sm:$0xff]
    %v122 = vld [vmem:[%s2 + $0x68] sm:$0xff]
    %v123 = vld [vmem:[%s2 + $0x70] sm:$0xff]
    %v124 = vld [vmem:[%s2 + $0x78] sm:$0xff]
    %125 = vmatprep.subr.mxu0 0.0
    %126 = vmatpush1.msra.mxu0 %v109
    %127 = vmatprep.subr.mxu0 0.0
    %128 = vmatpush1.msra.mxu0 %v110
    %129 = vmatprep.subr.mxu0 0.0
    %130 = vmatpush1.msra.mxu0 %v111
    %131 = vmatprep.subr.mxu0 0.0
    %132 = vmatpush1.msra.mxu0 %v112
    %133 = vmatprep.subr.mxu0 0.0
    %134 = vmatpush1.msra.mxu0 %v113
    %135 = vmatprep.subr.mxu0 0.0
    %136 = vmatpush1.msra.mxu0 %v114
    %137 = vmatprep.subr.mxu0 0.0
    %138 = vmatpush1.msra.mxu0 %v115
    %139 = vmatprep.subr.mxu0 0.0
    %140 = vmatpush1.msra.mxu0 %v116
    %141 = vmatprep.subr.mxu0 0.0
    %142 = vmatpush1.msra.mxu0 %v117
    %143 = vmatprep.subr.mxu0 0.0
    %144 = vmatpush1.msra.mxu0 %v118
    %145 = vmatprep.subr.mxu0 0.0
    %146 = vmatpush1.msra.mxu0 %v119
    %147 = vmatprep.subr.mxu0 0.0
    %148 = vmatpush1.msra.mxu0 %v120
    %149 = vmatprep.subr.mxu0 0.0
    %150 = vmatpush1.msra.mxu0 %v121
    %151 = vmatprep.subr.mxu0 0.0
    %152 = vmatpush1.msra.mxu0 %v122
    %153 = vmatprep.subr.mxu0 0.0
    %154 = vmatpush1.msra.mxu0 %v123
    %155 = vmatprep.subr.mxu0 0.0
    %156 = vmatpush1.msra.mxu0 %v124
    %157 = vmatprep.subr.mxu0 0.0
    %158 = vmatpush1.msra.mxu0 0.0
    %159 = vmatprep.subr.mxu0 0.0
    %160 = vmatpush1.msra.mxu0 0.0
    %161 = vmatprep.subr.mxu0 0.0
    %162 = vmatpush1.msra.mxu0 0.0
    %163 = vmatprep.subr.mxu0 0.0
    %164 = vmatpush1.msra.mxu0 0.0
    %165 = vmatprep.subr.mxu0 0.0
    %166 = vmatpush1.msra.mxu0 0.0
    %167 = vmatprep.subr.mxu0 0.0
    %168 = vmatpush1.msra.mxu0 0.0
    %169 = vmatprep.subr.mxu0 0.0
    %170 = vmatpush1.msra.mxu0 0.0
    %171 = vmatprep.subr.mxu0 0.0
    %172 = vmatpush1.msra.mxu0 0.0
    %173 = vmatprep.subr.mxu0 0.0
    %174 = vmatpush1.msra.mxu0 0.0
    %175 = vmatprep.subr.mxu0 0.0
    %176 = vmatpush1.msra.mxu0 0.0
    %177 = vmatprep.subr.mxu0 0.0
    %178 = vmatpush1.msra.mxu0 0.0
    %179 = vmatprep.subr.mxu0 0.0
    %180 = vmatpush1.msra.mxu0 0.0
    %181 = vmatprep.subr.mxu0 0.0
    %182 = vmatpush1.msra.mxu0 0.0
    %183 = vmatprep.subr.mxu0 0.0
    %184 = vmatpush1.msra.mxu0 0.0
    %185 = vmatprep.subr.mxu0 0.0
    %186 = vmatpush1.msra.mxu0 0.0
    %187 = vmatprep.subr.mxu0 0.0
    %188 = vmatpush1.msra.mxu0 0.0
    %189 = vmatprep.mubr.f32.mxu0 0.0
    %190 = vmatmul.mubr.f32.gmra.mrb[0].mxu0 %v101
    %v191 = vpop.f32.mrb[0].mxu0
    %v192 = vadd.f32 0.0, %v191
    %v193 = vpop.f32.mrb[0].mxu0
    %194 = vmatprep.mubr.f32.mxu0 0.0
    %195 = vmatmul.mubr.f32.gmra.mrb[0].mxu0 %v102
    %v196 = vpop.f32.mrb[0].mxu0
    %v197 = vadd.f32 0.0, %v196
    %v198 = vpop.f32.mrb[0].mxu0
    %199 = vmatprep.mubr.f32.mxu0 0.0
    %200 = vmatmul.mubr.f32.gmra.mrb[0].mxu0 %v103
    %v201 = vpop.f32.mrb[0].mxu0
    %v202 = vadd.f32 0.0, %v201
    %v203 = vpop.f32.mrb[0].mxu0
    %204 = vmatprep.mubr.f32.mxu0 0.0
    %205 = vmatmul.mubr.f32.gmra.mrb[0].mxu0 %v104
    %v206 = vpop.f32.mrb[0].mxu0
    %v207 = vadd.f32 0.0, %v206
    %v208 = vpop.f32.mrb[0].mxu0
    %209 = vmatprep.mubr.f32.mxu0 0.0
    %210 = vmatmul.mubr.f32.gmra.mrb[0].mxu0 %v105
    %v211 = vpop.f32.mrb[0].mxu0
    %v212 = vadd.f32 0.0, %v211
    %v213 = vpop.f32.mrb[0].mxu0
    %214 = vmatprep.mubr.f32.mxu0 0.0
    %215 = vmatmul.mubr.f32.gmra.mrb[0].mxu0 %v106
    %v216 = vpop.f32.mrb[0].mxu0
    %v217 = vadd.f32 0.0, %v216
    %v218 = vpop.f32.mrb[0].mxu0
    %219 = vmatprep.mubr.f32.mxu0 0.0
    %220 = vmatmul.mubr.f32.gmra.mrb[0].mxu0 %v107
    %v221 = vpop.f32.mrb[0].mxu0
    %v222 = vadd.f32 0.0, %v221
    %v223 = vpop.f32.mrb[0].mxu0
    %224 = vmatprep.mubr.f32.mxu0 0.0
    %225 = vmatmul.mubr.f32.gmra.mrb[0].mxu0 %v108
    %v226 = vpop.f32.mrb[0].mxu0
    %v227 = vadd.f32 0.0, %v226
    %v228 = vpop.f32.mrb[0].mxu0
    %229 = vdwg.mxu0
    %v230 = vpack.c.bf16 %v197, %v192
    %v231 = vpack.c.bf16 %v207, %v202
    %v232 = vpack.c.bf16 %v217, %v212
    %v233 = vpack.c.bf16 %v227, %v222
    %v234 = vld [vmem:[%s3] sm:$0x1]
    %v236 = vlaneseq
    %v237 = vshrl.u32 %v236, 7
    %v238 = vsub.s32 0, %v237
    %v239 = vrot.slane %v234, %v238
    %v249 = vunpack.c.l.b16 %v93
    %v250 = vunpack.c.l.b16 %v94
    %v251 = vunpack.c.l.b16 %v95
    %v252 = vunpack.c.l.b16 %v96
    %v253 = vunpack.c.l.b16 %v97
    %v254 = vunpack.c.l.b16 %v98
    %v255 = vunpack.c.l.b16 %v99
    %v256 = vunpack.c.l.b16 %v100
    %v257 = vpack.c.b16 %v250, %v249
    %v258 = vpack.c.b16 %v252, %v251
    %v259 = vpack.c.b16 %v254, %v253
    %v260 = vpack.c.b16 %v256, %v255
    %vm261 = vcmask 523264
    %v263 = vsel %vm261, %v257, 0
    %v266 = vsel %vm261, %v258, 0
    %v269 = vsel %vm261, %v259, 0
    %v272 = vsel %vm261, %v260, 0
    %274 = vmatprep.subr.bf16.mxu0 0
    %275 = vmatpush1.bf16.msra.mxu0 %v230
    %276 = vmatprep.subr.bf16.mxu0 0
    %277 = vmatpush1.bf16.msra.mxu0 %v231
    %278 = vmatprep.subr.bf16.mxu0 0
    %279 = vmatpush1.bf16.msra.mxu0 %v232
    %280 = vmatprep.subr.bf16.mxu0 0
    %281 = vmatpush1.bf16.msra.mxu0 %v233
    %282 = vmatprep.subr.bf16.mxu0 0
    %283 = vmatpush1.bf16.msra.mxu0 0
    %284 = vmatprep.subr.bf16.mxu0 0
    %285 = vmatpush1.bf16.msra.mxu0 0
    %286 = vmatprep.subr.bf16.mxu0 0
    %287 = vmatpush1.bf16.msra.mxu0 0
    %288 = vmatprep.subr.bf16.mxu0 0
    %289 = vmatpush1.bf16.msra.mxu0 0
    %290 = vmatprep.subr.bf16.mxu0 0
    %291 = vmatpush1.bf16.msra.mxu0 0
    %292 = vmatprep.subr.bf16.mxu0 0
    %293 = vmatpush1.bf16.msra.mxu0 0
    %294 = vmatprep.subr.bf16.mxu0 0
    %295 = vmatpush1.bf16.msra.mxu0 0
    %296 = vmatprep.subr.bf16.mxu0 0
    %297 = vmatpush1.bf16.msra.mxu0 0
    %298 = vmatprep.subr.bf16.mxu0 0
    %299 = vmatpush1.bf16.msra.mxu0 0
    %300 = vmatprep.subr.bf16.mxu0 0
    %301 = vmatpush1.bf16.msra.mxu0 0
    %302 = vmatprep.subr.bf16.mxu0 0
    %303 = vmatpush1.bf16.msra.mxu0 0
    %304 = vmatprep.subr.bf16.mxu0 0
    %305 = vmatpush1.bf16.msra.mxu0 0
    %306 = vmatprep.mubr.bf16.mxu0 0
    %307 = vmatmul.mubr.bf16.gmra.mrb[0].mxu0 %v263
    %v308 = vpop.f32.mrb[0].mxu0
    %v309 = vadd.f32 %v239, %v308
    %v310 = vpop.f32.mrb[0].mxu0
    %v311 = vpop.f32.mrb[0].mxu0
    %v312 = vadd.f32 %v239, %v311
    %v313 = vpop.f32.mrb[0].mxu0
    %314 = vmatprep.mubr.bf16.mxu0 0
    %315 = vmatmul.mubr.bf16.gmra.mrb[0].mxu0 %v266
    %v316 = vpop.f32.mrb[0].mxu0
    %v317 = vadd.f32 %v239, %v316
    %v318 = vpop.f32.mrb[0].mxu0
    %v319 = vpop.f32.mrb[0].mxu0
    %v320 = vadd.f32 %v239, %v319
    %v321 = vpop.f32.mrb[0].mxu0
    %322 = vmatprep.mubr.bf16.mxu0 0
    %323 = vmatmul.mubr.bf16.gmra.mrb[0].mxu0 %v269
    %v324 = vpop.f32.mrb[0].mxu0
    %v325 = vadd.f32 %v239, %v324
    %v326 = vpop.f32.mrb[0].mxu0
    %v327 = vpop.f32.mrb[0].mxu0
    %v328 = vadd.f32 %v239, %v327
    %v329 = vpop.f32.mrb[0].mxu0
    %330 = vmatprep.mubr.bf16.mxu0 0
    %331 = vmatmul.mubr.bf16.gmra.mrb[0].mxu0 %v272
    %v332 = vpop.f32.mrb[0].mxu0
    %v333 = vadd.f32 %v239, %v332
    %v334 = vpop.f32.mrb[0].mxu0
    %v335 = vpop.f32.mrb[0].mxu0
    %v336 = vadd.f32 %v239, %v335
    %v337 = vpop.f32.mrb[0].mxu0
    %338 = vdwg.mxu0
    %v339 = vmax.f32 %v309, 0.0
    %v340 = vmax.f32 %v312, 0.0
    %v341 = vmax.f32 %v317, 0.0
    %v342 = vmax.f32 %v320, 0.0
    %v343 = vmax.f32 %v325, 0.0
    %v344 = vmax.f32 %v328, 0.0
    %v345 = vmax.f32 %v333, 0.0
    %v346 = vmax.f32 %v336, 0.0
    %v347 = vld [vmem:[%s4] sm:$0xff]
    %v348 = vld [vmem:[%s4 + $0x8] sm:$0xff]
    %v349 = vld [vmem:[%s4 + $0x10] sm:$0xff]
    %v350 = vld [vmem:[%s4 + $0x18] sm:$0xff]
    %v351 = vld [vmem:[%s4 + $0x20] sm:$0xff]
    %v352 = vld [vmem:[%s4 + $0x28] sm:$0xff]
    %v353 = vld [vmem:[%s4 + $0x30] sm:$0xff]
    %v354 = vld [vmem:[%s4 + $0x38] sm:$0xff]
    %v355 = vld [vmem:[%s4 + $0x40] sm:$0xff]
    %v356 = vld [vmem:[%s4 + $0x48] sm:$0xff]
    %v357 = vld [vmem:[%s4 + $0x50] sm:$0xff]
    %v358 = vld [vmem:[%s4 + $0x58] sm:$0xff]
    %v359 = vld [vmem:[%s4 + $0x60] sm:$0xff]
    %v360 = vld [vmem:[%s4 + $0x68] sm:$0xff]
    %v361 = vld [vmem:[%s4 + $0x70] sm:$0xff]
    %v362 = vld [vmem:[%s4 + $0x78] sm:$0xff]
    %363 = vmatprep.subr.mxu0 0.0
    %364 = vmatpush1.msra.mxu0 %v347
    %365 = vmatprep.subr.mxu0 0.0
    %366 = vmatpush1.msra.mxu0 %v348
    %367 = vmatprep.subr.mxu0 0.0
    %368 = vmatpush1.msra.mxu0 %v349
    %369 = vmatprep.subr.mxu0 0.0
    %370 = vmatpush1.msra.mxu0 %v350
    %371 = vmatprep.subr.mxu0 0.0
    %372 = vmatpush1.msra.mxu0 %v351
    %373 = vmatprep.subr.mxu0 0.0
    %374 = vmatpush1.msra.mxu0 %v352
    %375 = vmatprep.subr.mxu0 0.0
    %376 = vmatpush1.msra.mxu0 %v353
    %377 = vmatprep.subr.mxu0 0.0
    %378 = vmatpush1.msra.mxu0 %v354
    %379 = vmatprep.subr.mxu0 0.0
    %380 = vmatpush1.msra.mxu0 %v355
    %381 = vmatprep.subr.mxu0 0.0
    %382 = vmatpush1.msra.mxu0 %v356
    %383 = vmatprep.subr.mxu0 0.0
    %384 = vmatpush1.msra.mxu0 %v357
    %385 = vmatprep.subr.mxu0 0.0
    %386 = vmatpush1.msra.mxu0 %v358
    %387 = vmatprep.subr.mxu0 0.0
    %388 = vmatpush1.msra.mxu0 %v359
    %389 = vmatprep.subr.mxu0 0.0
    %390 = vmatpush1.msra.mxu0 %v360
    %391 = vmatprep.subr.mxu0 0.0
    %392 = vmatpush1.msra.mxu0 %v361
    %393 = vmatprep.subr.mxu0 0.0
    %394 = vmatpush1.msra.mxu0 %v362
    %395 = vmatprep.subr.mxu0 0.0
    %396 = vmatpush1.msra.mxu0 0.0
    %397 = vmatprep.subr.mxu0 0.0
    %398 = vmatpush1.msra.mxu0 0.0
    %399 = vmatprep.subr.mxu0 0.0
    %400 = vmatpush1.msra.mxu0 0.0
    %401 = vmatprep.subr.mxu0 0.0
    %402 = vmatpush1.msra.mxu0 0.0
    %403 = vmatprep.subr.mxu0 0.0
    %404 = vmatpush1.msra.mxu0 0.0
    %405 = vmatprep.subr.mxu0 0.0
    %406 = vmatpush1.msra.mxu0 0.0
    %407 = vmatprep.subr.mxu0 0.0
    %408 = vmatpush1.msra.mxu0 0.0
    %409 = vmatprep.subr.mxu0 0.0
    %410 = vmatpush1.msra.mxu0 0.0
    %411 = vmatprep.subr.mxu0 0.0
    %412 = vmatpush1.msra.mxu0 0.0
    %413 = vmatprep.subr.mxu0 0.0
    %414 = vmatpush1.msra.mxu0 0.0
    %415 = vmatprep.subr.mxu0 0.0
    %416 = vmatpush1.msra.mxu0 0.0
    %417 = vmatprep.subr.mxu0 0.0
    %418 = vmatpush1.msra.mxu0 0.0
    %419 = vmatprep.subr.mxu0 0.0
    %420 = vmatpush1.msra.mxu0 0.0
    %421 = vmatprep.subr.mxu0 0.0
    %422 = vmatpush1.msra.mxu0 0.0
    %423 = vmatprep.subr.mxu0 0.0
    %424 = vmatpush1.msra.mxu0 0.0
    %425 = vmatprep.subr.mxu0 0.0
    %426 = vmatpush1.msra.mxu0 0.0
    %427 = vmatprep.mubr.f32.mxu0 0.0
    %428 = vmatmul.mubr.f32.gmra.mrb[0].mxu0 %v339
    %v429 = vpop.f32.mrb[0].mxu0
    %v430 = vadd.f32 0.0, %v429
    %v431 = vpop.f32.mrb[0].mxu0
    %432 = vmatprep.mubr.f32.mxu0 0.0
    %433 = vmatmul.mubr.f32.gmra.mrb[0].mxu0 %v340
    %v434 = vpop.f32.mrb[0].mxu0
    %v435 = vadd.f32 0.0, %v434
    %v436 = vpop.f32.mrb[0].mxu0
    %437 = vmatprep.mubr.f32.mxu0 0.0
    %438 = vmatmul.mubr.f32.gmra.mrb[0].mxu0 %v341
    %v439 = vpop.f32.mrb[0].mxu0
    %v440 = vadd.f32 0.0, %v439
    %v441 = vpop.f32.mrb[0].mxu0
    %442 = vmatprep.mubr.f32.mxu0 0.0
    %443 = vmatmul.mubr.f32.gmra.mrb[0].mxu0 %v342
    %v444 = vpop.f32.mrb[0].mxu0
    %v445 = vadd.f32 0.0, %v444
    %v446 = vpop.f32.mrb[0].mxu0
    %447 = vmatprep.mubr.f32.mxu0 0.0
    %448 = vmatmul.mubr.f32.gmra.mrb[0].mxu0 %v343
    %v449 = vpop.f32.mrb[0].mxu0
    %v450 = vadd.f32 0.0, %v449
    %v451 = vpop.f32.mrb[0].mxu0
    %452 = vmatprep.mubr.f32.mxu0 0.0
    %453 = vmatmul.mubr.f32.gmra.mrb[0].mxu0 %v344
    %v454 = vpop.f32.mrb[0].mxu0
    %v455 = vadd.f32 0.0, %v454
    %v456 = vpop.f32.mrb[0].mxu0
    %457 = vmatprep.mubr.f32.mxu0 0.0
    %458 = vmatmul.mubr.f32.gmra.mrb[0].mxu0 %v345
    %v459 = vpop.f32.mrb[0].mxu0
    %v460 = vadd.f32 0.0, %v459
    %v461 = vpop.f32.mrb[0].mxu0
    %462 = vmatprep.mubr.f32.mxu0 0.0
    %463 = vmatmul.mubr.f32.gmra.mrb[0].mxu0 %v346
    %v464 = vpop.f32.mrb[0].mxu0
    %v465 = vadd.f32 0.0, %v464
    %v466 = vpop.f32.mrb[0].mxu0
    %467 = vdwg.mxu0
    %v468 = vpack.c.bf16 %v435, %v430
    %v469 = vpack.c.bf16 %v445, %v440
    %v470 = vpack.c.bf16 %v455, %v450
    %v471 = vpack.c.bf16 %v465, %v460
    %v472 = vld [vmem:[%s5] sm:$0x1]
    %v474 = vlaneseq
    %v475 = vshrl.u32 %v474, 7
    %v476 = vsub.s32 0, %v475
    %v477 = vrot.slane %v472, %v476
    %479 = vmatprep.subr.bf16.mxu0 0
    %480 = vmatpush1.bf16.msra.mxu0 %v468
    %481 = vmatprep.subr.bf16.mxu0 0
    %482 = vmatpush1.bf16.msra.mxu0 %v469
    %483 = vmatprep.subr.bf16.mxu0 0
    %484 = vmatpush1.bf16.msra.mxu0 %v470
    %485 = vmatprep.subr.bf16.mxu0 0
    %486 = vmatpush1.bf16.msra.mxu0 %v471
    %487 = vmatprep.subr.bf16.mxu0 0
    %488 = vmatpush1.bf16.msra.mxu0 0
    %489 = vmatprep.subr.bf16.mxu0 0
    %490 = vmatpush1.bf16.msra.mxu0 0
    %491 = vmatprep.subr.bf16.mxu0 0
    %492 = vmatpush1.bf16.msra.mxu0 0
    %493 = vmatprep.subr.bf16.mxu0 0
    %494 = vmatpush1.bf16.msra.mxu0 0
    %495 = vmatprep.subr.bf16.mxu0 0
    %496 = vmatpush1.bf16.msra.mxu0 0
    %497 = vmatprep.subr.bf16.mxu0 0
    %498 = vmatpush1.bf16.msra.mxu0 0
    %499 = vmatprep.subr.bf16.mxu0 0
    %500 = vmatpush1.bf16.msra.mxu0 0
    %501 = vmatprep.subr.bf16.mxu0 0
    %502 = vmatpush1.bf16.msra.mxu0 0
    %503 = vmatprep.subr.bf16.mxu0 0
    %504 = vmatpush1.bf16.msra.mxu0 0
    %505 = vmatprep.subr.bf16.mxu0 0
    %506 = vmatpush1.bf16.msra.mxu0 0
    %507 = vmatprep.subr.bf16.mxu0 0
    %508 = vmatpush1.bf16.msra.mxu0 0
    %509 = vmatprep.subr.bf16.mxu0 0
    %510 = vmatpush1.bf16.msra.mxu0 0
    %511 = vmatprep.mubr.bf16.mxu0 0
    %512 = vmatmul.mubr.bf16.gmra.mrb[0].mxu0 %v263
    %v513 = vpop.f32.mrb[0].mxu0
    %v514 = vadd.f32 %v477, %v513
    %v515 = vpop.f32.mrb[0].mxu0
    %v516 = vpop.f32.mrb[0].mxu0
    %v517 = vadd.f32 %v477, %v516
    %v518 = vpop.f32.mrb[0].mxu0
    %519 = vmatprep.mubr.bf16.mxu0 0
    %520 = vmatmul.mubr.bf16.gmra.mrb[0].mxu0 %v266
    %v521 = vpop.f32.mrb[0].mxu0
    %v522 = vadd.f32 %v477, %v521
    %v523 = vpop.f32.mrb[0].mxu0
    %v524 = vpop.f32.mrb[0].mxu0
    %v525 = vadd.f32 %v477, %v524
    %v526 = vpop.f32.mrb[0].mxu0
    %527 = vmatprep.mubr.bf16.mxu0 0
    %528 = vmatmul.mubr.bf16.gmra.mrb[0].mxu0 %v269
    %v529 = vpop.f32.mrb[0].mxu0
    %v530 = vadd.f32 %v477, %v529
    %v531 = vpop.f32.mrb[0].mxu0
    %v532 = vpop.f32.mrb[0].mxu0
    %v533 = vadd.f32 %v477, %v532
    %v534 = vpop.f32.mrb[0].mxu0
    %535 = vmatprep.mubr.bf16.mxu0 0
    %536 = vmatmul.mubr.bf16.gmra.mrb[0].mxu0 %v272
    %v537 = vpop.f32.mrb[0].mxu0
    %v538 = vadd.f32 %v477, %v537
    %v539 = vpop.f32.mrb[0].mxu0
    %v540 = vpop.f32.mrb[0].mxu0
    %v541 = vadd.f32 %v477, %v540
    %v542 = vpop.f32.mrb[0].mxu0
    %543 = vdwg.mxu0
    %v544 = vmax.f32 %v514, 0.0
    %v545 = vmax.f32 %v517, 0.0
    %v546 = vmax.f32 %v522, 0.0
    %v547 = vmax.f32 %v525, 0.0
    %v548 = vmax.f32 %v530, 0.0
    %v549 = vmax.f32 %v533, 0.0
    %v550 = vmax.f32 %v538, 0.0
    %v551 = vmax.f32 %v541, 0.0
    %v552 = vld [vmem:[#allocation2] sm:$0xff]
    %v553 = vld [vmem:[#allocation2 + $0x8] sm:$0xff]
    %v554 = vld [vmem:[#allocation2 + $0x10] sm:$0xff]
    %v555 = vld [vmem:[#allocation2 + $0x18] sm:$0xff]
    %v556 = vld [vmem:[#allocation2 + $0x20] sm:$0xff]
    %v557 = vld [vmem:[#allocation2 + $0x28] sm:$0xff]
    %v558 = vld [vmem:[#allocation2 + $0x30] sm:$0xff]
    %v559 = vld [vmem:[#allocation2 + $0x38] sm:$0xff]
    %v560 = vld [vmem:[#allocation2 + $0x40] sm:$0xff]
    %v561 = vld [vmem:[#allocation2 + $0x48] sm:$0xff]
    %v562 = vld [vmem:[#allocation2 + $0x50] sm:$0xff]
    %v563 = vld [vmem:[#allocation2 + $0x58] sm:$0xff]
    %v564 = vld [vmem:[#allocation2 + $0x60] sm:$0xff]
    %v565 = vld [vmem:[#allocation2 + $0x68] sm:$0xff]
    %v566 = vld [vmem:[#allocation2 + $0x70] sm:$0xff]
    %v567 = vld [vmem:[#allocation2 + $0x78] sm:$0xff]
    %568 = vmatprep.subr.mxu0 0.0
    %569 = vmatpush1.msra.mxu0 %v552
    %570 = vmatprep.subr.mxu0 0.0
    %571 = vmatpush1.msra.mxu0 %v553
    %572 = vmatprep.subr.mxu0 0.0
    %573 = vmatpush1.msra.mxu0 %v554
    %574 = vmatprep.subr.mxu0 0.0
    %575 = vmatpush1.msra.mxu0 %v555
    %576 = vmatprep.subr.mxu0 0.0
    %577 = vmatpush1.msra.mxu0 %v556
    %578 = vmatprep.subr.mxu0 0.0
    %579 = vmatpush1.msra.mxu0 %v557
    %580 = vmatprep.subr.mxu0 0.0
    %581 = vmatpush1.msra.mxu0 %v558
    %582 = vmatprep.subr.mxu0 0.0
    %583 = vmatpush1.msra.mxu0 %v559
    %584 = vmatprep.subr.mxu0 0.0
    %585 = vmatpush1.msra.mxu0 %v560
    %586 = vmatprep.subr.mxu0 0.0
    %587 = vmatpush1.msra.mxu0 %v561
    %588 = vmatprep.subr.mxu0 0.0
    %589 = vmatpush1.msra.mxu0 %v562
    %590 = vmatprep.subr.mxu0 0.0
    %591 = vmatpush1.msra.mxu0 %v563
    %592 = vmatprep.subr.mxu0 0.0
    %593 = vmatpush1.msra.mxu0 %v564
    %594 = vmatprep.subr.mxu0 0.0
    %595 = vmatpush1.msra.mxu0 %v565
    %596 = vmatprep.subr.mxu0 0.0
    %597 = vmatpush1.msra.mxu0 %v566
    %598 = vmatprep.subr.mxu0 0.0
    %599 = vmatpush1.msra.mxu0 %v567
    %600 = vmatprep.subr.mxu0 0.0
    %601 = vmatpush1.msra.mxu0 0.0
    %602 = vmatprep.subr.mxu0 0.0
    %603 = vmatpush1.msra.mxu0 0.0
    %604 = vmatprep.subr.mxu0 0.0
    %605 = vmatpush1.msra.mxu0 0.0
    %606 = vmatprep.subr.mxu0 0.0
    %607 = vmatpush1.msra.mxu0 0.0
    %608 = vmatprep.subr.mxu0 0.0
    %609 = vmatpush1.msra.mxu0 0.0
    %610 = vmatprep.subr.mxu0 0.0
    %611 = vmatpush1.msra.mxu0 0.0
    %612 = vmatprep.subr.mxu0 0.0
    %613 = vmatpush1.msra.mxu0 0.0
    %614 = vmatprep.subr.mxu0 0.0
    %615 = vmatpush1.msra.mxu0 0.0
    %616 = vmatprep.subr.mxu0 0.0
    %617 = vmatpush1.msra.mxu0 0.0
    %618 = vmatprep.subr.mxu0 0.0
    %619 = vmatpush1.msra.mxu0 0.0
    %620 = vmatprep.subr.mxu0 0.0
    %621 = vmatpush1.msra.mxu0 0.0
    %622 = vmatprep.subr.mxu0 0.0
    %623 = vmatpush1.msra.mxu0 0.0
    %624 = vmatprep.subr.mxu0 0.0
    %625 = vmatpush1.msra.mxu0 0.0
    %626 = vmatprep.subr.mxu0 0.0
    %627 = vmatpush1.msra.mxu0 0.0
    %628 = vmatprep.subr.mxu0 0.0
    %629 = vmatpush1.msra.mxu0 0.0
    %630 = vmatprep.subr.mxu0 0.0
    %631 = vmatpush1.msra.mxu0 0.0
    %632 = vmatprep.mubr.f32.mxu0 0.0
    %633 = vmatmul.mubr.f32.gmra.mrb[0].mxu0 %v544
    %v634 = vpop.f32.mrb[0].mxu0
    %v635 = vadd.f32 0.0, %v634
    %v636 = vpop.f32.mrb[0].mxu0
    %637 = vmatprep.mubr.f32.mxu0 0.0
    %638 = vmatmul.mubr.f32.gmra.mrb[0].mxu0 %v545
    %v639 = vpop.f32.mrb[0].mxu0
    %v640 = vadd.f32 0.0, %v639
    %v641 = vpop.f32.mrb[0].mxu0
    %642 = vmatprep.mubr.f32.mxu0 0.0
    %643 = vmatmul.mubr.f32.gmra.mrb[0].mxu0 %v546
    %v644 = vpop.f32.mrb[0].mxu0
    %v645 = vadd.f32 0.0, %v644
    %v646 = vpop.f32.mrb[0].mxu0
    %647 = vmatprep.mubr.f32.mxu0 0.0
    %648 = vmatmul.mubr.f32.gmra.mrb[0].mxu0 %v547
    %v649 = vpop.f32.mrb[0].mxu0
    %v650 = vadd.f32 0.0, %v649
    %v651 = vpop.f32.mrb[0].mxu0
    %652 = vmatprep.mubr.f32.mxu0 0.0
    %653 = vmatmul.mubr.f32.gmra.mrb[0].mxu0 %v548
    %v654 = vpop.f32.mrb[0].mxu0
    %v655 = vadd.f32 0.0, %v654
    %v656 = vpop.f32.mrb[0].mxu0
    %657 = vmatprep.mubr.f32.mxu0 0.0
    %658 = vmatmul.mubr.f32.gmra.mrb[0].mxu0 %v549
    %v659 = vpop.f32.mrb[0].mxu0
    %v660 = vadd.f32 0.0, %v659
    %v661 = vpop.f32.mrb[0].mxu0
    %662 = vmatprep.mubr.f32.mxu0 0.0
    %663 = vmatmul.mubr.f32.gmra.mrb[0].mxu0 %v550
    %v664 = vpop.f32.mrb[0].mxu0
    %v665 = vadd.f32 0.0, %v664
    %v666 = vpop.f32.mrb[0].mxu0
    %667 = vmatprep.mubr.f32.mxu0 0.0
    %668 = vmatmul.mubr.f32.gmra.mrb[0].mxu0 %v551
    %v669 = vpop.f32.mrb[0].mxu0
    %v670 = vadd.f32 0.0, %v669
    %v671 = vpop.f32.mrb[0].mxu0
    %672 = vdwg.mxu0
    %v673 = vpack.c.bf16 %v640, %v635
    %v674 = vpack.c.bf16 %v650, %v645
    %v675 = vpack.c.bf16 %v660, %v655
    %v676 = vpack.c.bf16 %v670, %v665
    %v677 = vld [vmem:[%s7] sm:$0x1]
    %v679 = vlaneseq
    %v680 = vshrl.u32 %v679, 7
    %v681 = vsub.s32 0, %v680
    %v682 = vrot.slane %v677, %v681
    %684 = vmatprep.subr.bf16.mxu0 0
    %685 = vmatpush1.bf16.msra.mxu0 %v673
    %686 = vmatprep.subr.bf16.mxu0 0
    %687 = vmatpush1.bf16.msra.mxu0 %v674
    %688 = vmatprep.subr.bf16.mxu0 0
    %689 = vmatpush1.bf16.msra.mxu0 %v675
    %690 = vmatprep.subr.bf16.mxu0 0
    %691 = vmatpush1.bf16.msra.mxu0 %v676
    %692 = vmatprep.subr.bf16.mxu0 0
    %693 = vmatpush1.bf16.msra.mxu0 0
    %694 = vmatprep.subr.bf16.mxu0 0
    %695 = vmatpush1.bf16.msra.mxu0 0
    %696 = vmatprep.subr.bf16.mxu0 0
    %697 = vmatpush1.bf16.msra.mxu0 0
    %698 = vmatprep.subr.bf16.mxu0 0
    %699 = vmatpush1.bf16.msra.mxu0 0
    %700 = vmatprep.subr.bf16.mxu0 0
    %701 = vmatpush1.bf16.msra.mxu0 0
    %702 = vmatprep.subr.bf16.mxu0 0
    %703 = vmatpush1.bf16.msra.mxu0 0
    %704 = vmatprep.subr.bf16.mxu0 0
    %705 = vmatpush1.bf16.msra.mxu0 0
    %706 = vmatprep.subr.bf16.mxu0 0
    %707 = vmatpush1.bf16.msra.mxu0 0
    %708 = vmatprep.subr.bf16.mxu0 0
    %709 = vmatpush1.bf16.msra.mxu0 0
    %710 = vmatprep.subr.bf16.mxu0 0
    %711 = vmatpush1.bf16.msra.mxu0 0
    %712 = vmatprep.subr.bf16.mxu0 0
    %713 = vmatpush1.bf16.msra.mxu0 0
    %714 = vmatprep.subr.bf16.mxu0 0
    %715 = vmatpush1.bf16.msra.mxu0 0
    %716 = vmatprep.mubr.bf16.mxu0 0
    %717 = vmatmul.mubr.bf16.gmra.mrb[0].mxu0 %v263
    %v718 = vpop.f32.mrb[0].mxu0
    %v719 = vadd.f32 %v682, %v718
    %v720 = vpop.f32.mrb[0].mxu0
    %v721 = vpop.f32.mrb[0].mxu0
    %v722 = vadd.f32 %v682, %v721
    %v723 = vpop.f32.mrb[0].mxu0
    %724 = vmatprep.mubr.bf16.mxu0 0
    %725 = vmatmul.mubr.bf16.gmra.mrb[0].mxu0 %v266
    %v726 = vpop.f32.mrb[0].mxu0
    %v727 = vadd.f32 %v682, %v726
    %v728 = vpop.f32.mrb[0].mxu0
    %v729 = vpop.f32.mrb[0].mxu0
    %v730 = vadd.f32 %v682, %v729
    %v731 = vpop.f32.mrb[0].mxu0
    %732 = vmatprep.mubr.bf16.mxu0 0
    %733 = vmatmul.mubr.bf16.gmra.mrb[0].mxu0 %v269
    %v734 = vpop.f32.mrb[0].mxu0
    %v735 = vadd.f32 %v682, %v734
    %v736 = vpop.f32.mrb[0].mxu0
    %v737 = vpop.f32.mrb[0].mxu0
    %v738 = vadd.f32 %v682, %v737
    %v739 = vpop.f32.mrb[0].mxu0
    %740 = vmatprep.mubr.bf16.mxu0 0
    %741 = vmatmul.mubr.bf16.gmra.mrb[0].mxu0 %v272
    %v742 = vpop.f32.mrb[0].mxu0
    %v743 = vadd.f32 %v682, %v742
    %v744 = vpop.f32.mrb[0].mxu0
    %v745 = vpop.f32.mrb[0].mxu0
    %v746 = vadd.f32 %v682, %v745
    %v747 = vpop.f32.mrb[0].mxu0
    %748 = vdwg.mxu0
    %v749 = vmax.f32 %v719, 0.0
    %v750 = vmax.f32 %v722, 0.0
    %v751 = vmax.f32 %v727, 0.0
    %v752 = vmax.f32 %v730, 0.0
    %v753 = vmax.f32 %v735, 0.0
    %v754 = vmax.f32 %v738, 0.0
    %v755 = vmax.f32 %v743, 0.0
    %v756 = vmax.f32 %v746, 0.0
    %v757 = vld [vmem:[%s8] sm:$0x3]
    %v759 = vsel %vm261, %v757, 0
    %761 = vmatprep.subr.mxu0 0.0
    %762 = vmatpush1.msra.mxu0 %v749
    %763 = vmatprep.subr.mxu0 0.0
    %764 = vmatpush1.msra.mxu0 %v750
    %765 = vmatprep.subr.mxu0 0.0
    %766 = vmatpush1.msra.mxu0 %v751
    %767 = vmatprep.subr.mxu0 0.0
    %768 = vmatpush1.msra.mxu0 %v752
    %769 = vmatprep.subr.mxu0 0.0
    %770 = vmatpush1.msra.mxu0 %v753
    %771 = vmatprep.subr.mxu0 0.0
    %772 = vmatpush1.msra.mxu0 %v754
    %773 = vmatprep.subr.mxu0 0.0
    %774 = vmatpush1.msra.mxu0 %v755
    %775 = vmatprep.subr.mxu0 0.0
    %776 = vmatpush1.msra.mxu0 %v756
    %777 = vmatprep.subr.mxu0 0.0
    %778 = vmatpush1.msra.mxu0 0.0
    %779 = vmatprep.subr.mxu0 0.0
    %780 = vmatpush1.msra.mxu0 0.0
    %781 = vmatprep.subr.mxu0 0.0
    %782 = vmatpush1.msra.mxu0 0.0
    %783 = vmatprep.subr.mxu0 0.0
    %784 = vmatpush1.msra.mxu0 0.0
    %785 = vmatprep.subr.mxu0 0.0
    %786 = vmatpush1.msra.mxu0 0.0
    %787 = vmatprep.subr.mxu0 0.0
    %788 = vmatpush1.msra.mxu0 0.0
    %789 = vmatprep.subr.mxu0 0.0
    %790 = vmatpush1.msra.mxu0 0.0
    %791 = vmatprep.subr.mxu0 0.0
    %792 = vmatpush1.msra.mxu0 0.0
    %793 = vmatprep.subr.mxu0 0.0
    %794 = vmatpush1.msra.mxu0 0.0
    %795 = vmatprep.subr.mxu0 0.0
    %796 = vmatpush1.msra.mxu0 0.0
    %797 = vmatprep.subr.mxu0 0.0
    %798 = vmatpush1.msra.mxu0 0.0
    %799 = vmatprep.subr.mxu0 0.0
    %800 = vmatpush1.msra.mxu0 0.0
    %801 = vmatprep.subr.mxu0 0.0
    %802 = vmatpush1.msra.mxu0 0.0
    %803 = vmatprep.subr.mxu0 0.0
    %804 = vmatpush1.msra.mxu0 0.0
    %805 = vmatprep.subr.mxu0 0.0
    %806 = vmatpush1.msra.mxu0 0.0
    %807 = vmatprep.subr.mxu0 0.0
    %808 = vmatpush1.msra.mxu0 0.0
    %809 = vmatprep.subr.mxu0 0.0
    %810 = vmatpush1.msra.mxu0 0.0
    %811 = vmatprep.subr.mxu0 0.0
    %812 = vmatpush1.msra.mxu0 0.0
    %813 = vmatprep.subr.mxu0 0.0
    %814 = vmatpush1.msra.mxu0 0.0
    %815 = vmatprep.subr.mxu0 0.0
    %816 = vmatpush1.msra.mxu0 0.0
    %817 = vmatprep.subr.mxu0 0.0
    %818 = vmatpush1.msra.mxu0 0.0
    %819 = vmatprep.subr.mxu0 0.0
    %820 = vmatpush1.msra.mxu0 0.0
    %821 = vmatprep.subr.mxu0 0.0
    %822 = vmatpush1.msra.mxu0 0.0
    %823 = vmatprep.subr.mxu0 0.0
    %824 = vmatpush1.msra.mxu0 0.0
    %825 = vmatprep.mubr.f32.mxu0 0.0
    %826 = vmatmul.mubr.f32.gmra.mrb[0].mxu0 %v759
    %v827 = vpop.f32.mrb[0].mxu0
    %v828 = vadd.f32 0.0, %v827
    %v829 = vpop.f32.mrb[0].mxu0
    %830 = vdwg.mxu0
    %vm831 = vcmask 1041408
    %v832 = vsel %vm831, %v828, 0.0
    %v833 = vrot.slane %v832, 4
    %v834 = vadd.f32 %v832, %v833
    %v835 = vrot.slane %v834, 2
    %v836 = vadd.f32 %v834, %v835
    %v837 = vrot.slane %v836, 1
    %v838 = vadd.f32 %v836, %v837
    %v839 = vrcp.pop 2.0
    %v840 = vmul.f32 %v838, %v839
    %v841 = vsub.f32 %v828, %v840
    %v842 = vmul.f32 %v841, %v841
    %v843 = vsel %vm831, %v842, 0.0
    %v844 = vrot.slane %v843, 4
    %v845 = vadd.f32 %v843, %v844
    %v846 = vrot.slane %v845, 2
    %v847 = vadd.f32 %v845, %v846
    %v848 = vrot.slane %v847, 1
    %v849 = vadd.f32 %v847, %v848
    %v850 = vmul.f32 %v849, %v839
    %v851 = vadd.f32 %v850, 1e-05
    %v852 = vrsqrt.pop %v851
    %v853 = vmul.f32 %v841, %v852
    %v854 = vld [vmem:[%s9] sm:$0x1]
    %v856 = vlaneseq
    %v857 = vshrl.u32 %v856, 7
    %v858 = vsub.s32 0, %v857
    %v859 = vrot.slane %v854, %v858
    %v861 = vmul.f32 %v853, %v859
    %v862 = vld [vmem:[%s10] sm:$0x1]
    %v864 = vlaneseq
    %v865 = vshrl.u32 %v864, 7
    %v866 = vsub.s32 0, %v865
    %v867 = vrot.slane %v862, %v866
    %v869 = vadd.f32 %v861, %v867
    %v870 = vld [vmem:[#allocation5] sm:$0xff]
    %v871 = vld [vmem:[#allocation5 + $0x8] sm:$0xff]
    %v872 = vld [vmem:[#allocation5 + $0x10] sm:$0xff]
    %v873 = vld [vmem:[#allocation5 + $0x18] sm:$0xff]
    %v874 = vld [vmem:[#allocation5 + $0x20] sm:$0xff]
    %v875 = vld [vmem:[#allocation5 + $0x28] sm:$0xff]
    %v876 = vld [vmem:[#allocation5 + $0x30] sm:$0xff]
    %v877 = vld [vmem:[#allocation5 + $0x38] sm:$0xff]
    %v878 = vld [vmem:[#allocation5 + $0x40] sm:$0xff]
    %v879 = vld [vmem:[#allocation5 + $0x48] sm:$0xff]
    %v880 = vld [vmem:[#allocation5 + $0x50] sm:$0xff]
    %v881 = vld [vmem:[#allocation5 + $0x58] sm:$0xff]
    %v882 = vld [vmem:[#allocation5 + $0x60] sm:$0xff]
    %v883 = vld [vmem:[#allocation5 + $0x68] sm:$0xff]
    %v884 = vld [vmem:[#allocation5 + $0x70] sm:$0xff]
    %v885 = vld [vmem:[#allocation5 + $0x78] sm:$0xff]
    %v886 = vld [vmem:[%s12] sm:$0x1]
    %v888 = vlaneseq
    %v889 = vshrl.u32 %v888, 7
    %v890 = vsub.s32 0, %v889
    %v891 = vrot.slane %v886, %v890
    %893 = vmatprep.subr.mxu0 0.0
    %894 = vmatpush1.msra.mxu0 %v870
    %895 = vmatprep.subr.mxu0 0.0
    %896 = vmatpush1.msra.mxu0 %v871
    %897 = vmatprep.subr.mxu0 0.0
    %898 = vmatpush1.msra.mxu0 %v872
    %899 = vmatprep.subr.mxu0 0.0
    %900 = vmatpush1.msra.mxu0 %v873
    %901 = vmatprep.subr.mxu0 0.0
    %902 = vmatpush1.msra.mxu0 %v874
    %903 = vmatprep.subr.mxu0 0.0
    %904 = vmatpush1.msra.mxu0 %v875
    %905 = vmatprep.subr.mxu0 0.0
    %906 = vmatpush1.msra.mxu0 %v876
    %907 = vmatprep.subr.mxu0 0.0
    %908 = vmatpush1.msra.mxu0 %v877
    %909 = vmatprep.subr.mxu0 0.0
    %910 = vmatpush1.msra.mxu0 %v878
    %911 = vmatprep.subr.mxu0 0.0
    %912 = vmatpush1.msra.mxu0 %v879
    %913 = vmatprep.subr.mxu0 0.0
    %914 = vmatpush1.msra.mxu0 %v880
    %915 = vmatprep.subr.mxu0 0.0
    %916 = vmatpush1.msra.mxu0 %v881
    %917 = vmatprep.subr.mxu0 0.0
    %918 = vmatpush1.msra.mxu0 %v882
    %919 = vmatprep.subr.mxu0 0.0
    %920 = vmatpush1.msra.mxu0 %v883
    %921 = vmatprep.subr.mxu0 0.0
    %922 = vmatpush1.msra.mxu0 %v884
    %923 = vmatprep.subr.mxu0 0.0
    %924 = vmatpush1.msra.mxu0 %v885
    %925 = vmatprep.subr.mxu0 0.0
    %926 = vmatpush1.msra.mxu0 0.0
    %927 = vmatprep.subr.mxu0 0.0
    %928 = vmatpush1.msra.mxu0 0.0
    %929 = vmatprep.subr.mxu0 0.0
    %930 = vmatpush1.msra.mxu0 0.0
    %931 = vmatprep.subr.mxu0 0.0
    %932 = vmatpush1.msra.mxu0 0.0
    %933 = vmatprep.subr.mxu0 0.0
    %934 = vmatpush1.msra.mxu0 0.0
    %935 = vmatprep.subr.mxu0 0.0
    %936 = vmatpush1.msra.mxu0 0.0
    %937 = vmatprep.subr.mxu0 0.0
    %938 = vmatpush1.msra.mxu0 0.0
    %939 = vmatprep.subr.mxu0 0.0
    %940 = vmatpush1.msra.mxu0 0.0
    %941 = vmatprep.subr.mxu0 0.0
    %942 = vmatpush1.msra.mxu0 0.0
    %943 = vmatprep.subr.mxu0 0.0
    %944 = vmatpush1.msra.mxu0 0.0
    %945 = vmatprep.subr.mxu0 0.0
    %946 = vmatpush1.msra.mxu0 0.0
    %947 = vmatprep.subr.mxu0 0.0
    %948 = vmatpush1.msra.mxu0 0.0
    %949 = vmatprep.subr.mxu0 0.0
    %950 = vmatpush1.msra.mxu0 0.0
    %951 = vmatprep.subr.mxu0 0.0
    %952 = vmatpush1.msra.mxu0 0.0
    %953 = vmatprep.subr.mxu0 0.0
    %954 = vmatpush1.msra.mxu0 0.0
    %955 = vmatprep.subr.mxu0 0.0
    %956 = vmatpush1.msra.mxu0 0.0
    %957 = vmatprep.mubr.f32.mxu0 0.0
    %958 = vmatmul.mubr.f32.gmra.mrb[0].mxu0 %v869
    %v959 = vpop.f32.mrb[0].mxu0
    %v960 = vadd.f32 %v891, %v959
    %v961 = vpop.f32.mrb[0].mxu0
    %962 = vdwg.mxu0
    %v963 = vmax.f32 %v960, 0.0
    %v964 = vld [vmem:[#allocation7] sm:$0xff]
    %v965 = vld [vmem:[#allocation7 + $0x8] sm:$0xff]
    %v966 = vld [vmem:[#allocation7 + $0x10] sm:$0xff]
    %v967 = vld [vmem:[#allocation7 + $0x18] sm:$0xff]
    %v968 = vld [vmem:[#allocation7 + $0x20] sm:$0xff]
    %v969 = vld [vmem:[#allocation7 + $0x28] sm:$0xff]
    %v970 = vld [vmem:[#allocation7 + $0x30] sm:$0xff]
    %v971 = vld [vmem:[#allocation7 + $0x38] sm:$0xff]
    %v972 = vld [vmem:[#allocation7 + $0x40] sm:$0xff]
    %v973 = vld [vmem:[#allocation7 + $0x48] sm:$0xff]
    %v974 = vld [vmem:[#allocation7 + $0x50] sm:$0xff]
    %v975 = vld [vmem:[#allocation7 + $0x58] sm:$0xff]
    %v976 = vld [vmem:[#allocation7 + $0x60] sm:$0xff]
    %v977 = vld [vmem:[#allocation7 + $0x68] sm:$0xff]
    %v978 = vld [vmem:[#allocation7 + $0x70] sm:$0xff]
    %v979 = vld [vmem:[#allocation7 + $0x78] sm:$0xff]
    %v980 = vld [vmem:[%s14] sm:$0x1]
    %v982 = vlaneseq
    %v983 = vshrl.u32 %v982, 7
    %v984 = vsub.s32 0, %v983
    %v985 = vrot.slane %v980, %v984
    %987 = vmatprep.subr.mxu0 0.0
    %988 = vmatpush1.msra.mxu0 %v964
    %989 = vmatprep.subr.mxu0 0.0
    %990 = vmatpush1.msra.mxu0 %v965
    %991 = vmatprep.subr.mxu0 0.0
    %992 = vmatpush1.msra.mxu0 %v966
    %993 = vmatprep.subr.mxu0 0.0
    %994 = vmatpush1.msra.mxu0 %v967
    %995 = vmatprep.subr.mxu0 0.0
    %996 = vmatpush1.msra.mxu0 %v968
    %997 = vmatprep.subr.mxu0 0.0
    %998 = vmatpush1.msra.mxu0 %v969
    %999 = vmatprep.subr.mxu0 0.0
    %1000 = vmatpush1.msra.mxu0 %v970
    %1001 = vmatprep.subr.mxu0 0.0
    %1002 = vmatpush1.msra.mxu0 %v971
    %1003 = vmatprep.subr.mxu0 0.0
    %1004 = vmatpush1.msra.mxu0 %v972
    %1005 = vmatprep.subr.mxu0 0.0
    %1006 = vmatpush1.msra.mxu0 %v973
    %1007 = vmatprep.subr.mxu0 0.0
    %1008 = vmatpush1.msra.mxu0 %v974
    %1009 = vmatprep.subr.mxu0 0.0
    %1010 = vmatpush1.msra.mxu0 %v975
    %1011 = vmatprep.subr.mxu0 0.0
    %1012 = vmatpush1.msra.mxu0 %v976
    %1013 = vmatprep.subr.mxu0 0.0
    %1014 = vmatpush1.msra.mxu0 %v977
    %1015 = vmatprep.subr.mxu0 0.0
    %1016 = vmatpush1.msra.mxu0 %v978
    %1017 = vmatprep.subr.mxu0 0.0
    %1018 = vmatpush1.msra.mxu0 %v979
    %1019 = vmatprep.subr.mxu0 0.0
    %1020 = vmatpush1.msra.mxu0 0.0
    %1021 = vmatprep.subr.mxu0 0.0
    %1022 = vmatpush1.msra.mxu0 0.0
    %1023 = vmatprep.subr.mxu0 0.0
    %1024 = vmatpush1.msra.mxu0 0.0
    %1025 = vmatprep.subr.mxu0 0.0
    %1026 = vmatpush1.msra.mxu0 0.0
    %1027 = vmatprep.subr.mxu0 0.0
    %1028 = vmatpush1.msra.mxu0 0.0
    %1029 = vmatprep.subr.mxu0 0.0
    %1030 = vmatpush1.msra.mxu0 0.0
    %1031 = vmatprep.subr.mxu0 0.0
    %1032 = vmatpush1.msra.mxu0 0.0
    %1033 = vmatprep.subr.mxu0 0.0
    %1034 = vmatpush1.msra.mxu0 0.0
    %1035 = vmatprep.subr.mxu0 0.0
    %1036 = vmatpush1.msra.mxu0 0.0
    %1037 = vmatprep.subr.mxu0 0.0
    %1038 = vmatpush1.msra.mxu0 0.0
    %1039 = vmatprep.subr.mxu0 0.0
    %1040 = vmatpush1.msra.mxu0 0.0
    %1041 = vmatprep.subr.mxu0 0.0
    %1042 = vmatpush1.msra.mxu0 0.0
    %1043 = vmatprep.subr.mxu0 0.0
    %1044 = vmatpush1.msra.mxu0 0.0
    %1045 = vmatprep.subr.mxu0 0.0
    %1046 = vmatpush1.msra.mxu0 0.0
    %1047 = vmatprep.subr.mxu0 0.0
    %1048 = vmatpush1.msra.mxu0 0.0
    %1049 = vmatprep.subr.mxu0 0.0
    %1050 = vmatpush1.msra.mxu0 0.0
    %1051 = vmatprep.mubr.f32.mxu0 0.0
    %1052 = vmatmul.mubr.f32.gmra.mrb[0].mxu0 %v963
    %v1053 = vpop.f32.mrb[0].mxu0
    %v1054 = vadd.f32 %v985, %v1053
    %v1055 = vpop.f32.mrb[0].mxu0
    %1056 = vdwg.mxu0
    %v1057 = vlaneseq
    %v1058 = vand.u32 %v1057, 127
    %vm1059 = vcmp.lt.s32.totalorder %v1058, 10
    %v1060 = vsel %vm1059, %v1054, -1e+30
    %v1061 = vsel %vm831, %v1060, -inf
    %1062 = vmax.xlane.f32.xlu0 %v1061
    %v1063 = vpop.xlane.xlu0 %1062
    %v1064 = vsub.f32 %v1060, %v1063
    %v1065 = vmul.f32 %v1064, 1.442695
    %v1066 = vpow.pop %v1065
    %v1067 = vsel %vm831, %v1066, 0.0
    %1068 = vadd.xlane.f32.xlu0 %v1067
    %v1069 = vpop.xlane.xlu0 %1068
    %v1070 = vlog2.pop %v1069
    %v1071 = vmul.f32 %v1070, 0.6931472
    %v1072 = vsub.f32 %v1064, %v1071
    %1073 = vst [vmem:[#allocation8] sm:$0x3] %v1072
    // Predicated region
    $region74: #{gcn_net_forward.1} parent=1 // pred_check
      _
    $region75: #{gcn_net_forward.1} parent=1 // pred_check_branch
      %1075 = sbr.rel (0) target = $region77
    $region76: #{gcn_net_forward.1} parent=1 // pred_region
      %s1077 = ssub.s32 32, 32
      %1078 = vsyncadd [#allocation4], %s1077
      %s1080 = sshll.u32 [#allocation8], 4
      %s1081 = int_to_ptr.vmem [resolvable:$true] %s1080
      %1083 = dma.vmem_to_hbm [thread:$0]  %s1081, 32, %s15, [#allocation4]
    $region77: #{gcn_net_forward.1} parent=1 // pred_fallthru
      _
    // Predicated region
    $region78: #{gcn_net_forward.1} parent=1 // pred_check
      _
    $region79: #{gcn_net_forward.1} parent=1 // pred_check_branch
      %1085 = sbr.rel (0) target = $region81
    $region80: #{gcn_net_forward.1} parent=1 // pred_region
      %1086 = dma.done [#allocation4], 32
    $region81: #{gcn_net_forward.1} parent=1 // pred_fallthru
      _
    %1087 = vsyncpa [#allocation3], 1
    %1088 = vsyncpa [#allocation6], 1
    %1089 = vsyncpa [#allocation4], 1

</llo_original>
